<compile_context>
chip_gen: v6e
topology: v6e:2x2x1
jax: 0.10.0
libtpu: 0.0.40
codegen_flags: <defaults>
</compile_context>

<pallas_src>
import jax
import jax.numpy as jnp
from jax import lax
from jax.experimental import pallas as pl
from jax.experimental.pallas import tpu as pltpu


DST_TILE_MAX = 256          # dst rows per grid step when tiling (multiple of 32)


def _round_up(x, m):
    return (x + m - 1) // m * m


def _tpu_tiling_budget():
    """Returns (max src chunk, vmem_limit_bytes) sized per TPU generation."""
    try:
        vmem_cap = int(pltpu.get_tpu_info().vmem_capacity_bytes)
    except Exception:
        vmem_cap = 64 * 1024 * 1024          # conservative (v7x-sized) fallback
    # v5e/v6e (128 MiB physical VMEM) afford larger src chunks than v7x (64 MiB).
    src_chunk_max = 1024 if vmem_cap > (80 << 20) else 512
    vmem_limit = min(int(vmem_cap * 3 // 4), 96 * 1024 * 1024)
    return src_chunk_max, vmem_limit


# ----------------------------------------------------------------------------
# Pallas kernel: one fused GATConv layer, dst-tile x src-chunk grid,
# online (flash-style) edge softmax, all heads in a single invocation.
# ----------------------------------------------------------------------------
def _make_gat_kernel(n_heads: int, opad: int, apply_elu: bool, head_mean: bool):
    HO = n_heads * opad

    def kernel(x_dst_ref, x_src_ref, adj_ref, wcat_ref, bias_ref, out_ref,
               er_sc, m_sc, l_sc, acc_sc):
        k = pl.program_id(1)

        @pl.when(k == 0)
        def _init():
            # dst-side logits er_h, once per dst tile, from the aligned logits slab.
            er_sc[...] = jnp.dot(x_dst_ref[...], wcat_ref[:, HO:],
                                 preferred_element_type=jnp.float32)
            m_sc[...] = jnp.full_like(m_sc, -1e30)
            l_sc[...] = jnp.zeros_like(l_sc)
            acc_sc[...] = jnp.zeros_like(acc_sc)

        # One wide bf16 MXU matmul (f32 accum): every head's projected features plus
        # the per-src "left" logits el_h (attn_l folded into the packed weights).
        proj = jnp.dot(x_src_ref[...], wcat_ref[...],
                       preferred_element_type=jnp.float32)          # (sc, HO + 128)
        feat = proj[:, :HO].astype(jnp.bfloat16)                    # lane-aligned slab
        logit_t = proj[:, HO:].T                                    # (128, sc) one XLU transpose
        mask = adj_ref[...] != 0                                    # int8 adjacency, reused

        # TODO(synk): static unroll is fine for H<=4; use a loop/grid axis for large H.
        for h in range(n_heads):
            e = er_sc[:, h:h + 1] + logit_t[n_heads + h:n_heads + h + 1, :]
            e = jnp.maximum(e, 0.2 * e)                             # LeakyReLU(0.2)
            e = jnp.where(mask, e, -1e30)
            m_prev = m_sc[h]
            m_new = jnp.maximum(m_prev, jnp.max(e, axis=-1, keepdims=True))
            alpha = jnp.exp(m_prev - m_new)
            p = jnp.exp(e - m_new)
            # Keep: padded dst rows / padded src columns have no edges and would
            # otherwise get spurious uniform weight from exp(0)=1.
            p = jnp.where(mask, p, 0.0)
            l_sc[h] = alpha * l_sc[h] + jnp.sum(p, axis=-1, keepdims=True)
            acc_sc[h] = alpha * acc_sc[h] + jnp.dot(
                p.astype(jnp.bfloat16), feat[:, h * opad:(h + 1) * opad],
                preferred_element_type=jnp.float32)
            m_sc[h] = m_new

        @pl.when(k == pl.num_programs(1) - 1)
        def _finalize():
            if head_mean:                                           # last layer: head mean
                out = acc_sc[0] * pl.reciprocal(
                    jnp.maximum(l_sc[0], 1e-20), approx=True)
                for h in range(1, n_heads):
                    out = out + acc_sc[h] * pl.reciprocal(
                        jnp.maximum(l_sc[h], 1e-20), approx=True)
                out = out * (1.0 / n_heads) + bias_ref[...]
                if apply_elu:
                    out = jnp.where(out > 0.0, out,
                                    jnp.exp(jnp.minimum(out, 0.0)) - 1.0)
                out_ref[...] = out.astype(out_ref.dtype)
            else:                                                   # hidden: head flatten
                for h in range(n_heads):                            # 128-aligned stores
                    o = acc_sc[h] * pl.reciprocal(
                        jnp.maximum(l_sc[h], 1e-20), approx=True)
                    o = o + bias_ref[:, h * opad:(h + 1) * opad]
                    if apply_elu:
                        o = jnp.where(o > 0.0, o,
                                      jnp.exp(jnp.minimum(o, 0.0)) - 1.0)
                    out_ref[:, h * opad:(h + 1) * opad] = o.astype(out_ref.dtype)

    return kernel


# ----------------------------------------------------------------------------
# Parameter packing shared by the Pallas wrapper and the bf16 mirror reference.
# ----------------------------------------------------------------------------
def _prepare_layer(w, attn_l, attn_r, bias, head_mean, in_layout):
    """Pack per-head GAT weights into one lane-aligned bf16 matrix.

    Column layout (width H*opad + 128):
      [ head0 feats | head1 feats | ... | logits: er_0..er_{H-1}, el_0..el_{H-1}, 0-pad ]
    with each head's feature block padded to `opad` (multiple of 128) lanes.
    Rows are scatter-packed to match the (possibly per-head padded) column layout
    of the incoming features described by in_layout = (groups, size, pad).
    """
    n_heads, in_dim, out_dim = w.shape
    in_groups, in_size, in_pad = in_layout
    assert in_groups * in_size == in_dim, (in_layout, w.shape)
    opad = _round_up(out_dim, 128)

    wf = jnp.zeros((in_dim, n_heads * opad), jnp.float32)
    for h in range(n_heads):
        wf = wf.at[:, h * opad:h * opad + out_dim].set(w[h])
    w_er = jnp.einsum("hio,ho->ih", w, attn_r[:, 0, :], precision=lax.Precision.HIGHEST)
    w_el = jnp.einsum("hio,ho->ih", w, attn_l[:, 0, :], precision=lax.Precision.HIGHEST)
    wl = jnp.zeros((in_dim, 128), jnp.float32)
    wl = wl.at[:, :n_heads].set(w_er)
    wl = wl.at[:, n_heads:2 * n_heads].set(w_el)
    wcat = jnp.concatenate([wf, wl], axis=1)

    if in_pad != in_size:       # previous layer's per-head lane padding -> zero rows
        wcat = jnp.pad(wcat.reshape(in_groups, in_size, -1),
                       ((0, 0), (0, in_pad - in_size), (0, 0))
                       ).reshape(in_groups * in_pad, -1)

    if head_mean:
        b = jnp.mean(bias[:, 0, :], axis=0, keepdims=True)          # (1, out_dim)
        bias_arr = jnp.zeros((1, opad), jnp.float32).at[:, :out_dim].set(b)
    else:
        bias_arr = jnp.zeros((1, n_heads * opad), jnp.float32)
        for h in range(n_heads):
            bias_arr = bias_arr.at[0, h * opad:h * opad + out_dim].set(bias[h, 0, :])
    return wcat.astype(jnp.bfloat16), bias_arr


def gat_conv_pallas(x, adj, w, attn_l, attn_r, bias, *, apply_elu, head_mean, in_layout):
    """One fused GATConv layer.  Returns (padded output, output column layout).

    NOTE: `x` rows follow the DGL block convention -- the first n_dst rows of the
    src features are the dst nodes' own features.
    """
    n_heads, _, out_dim = w.shape
    assert 2 * n_heads <= 128
    in_groups, in_size, in_pad = in_layout
    in_dim_p = in_groups * in_pad
    assert x.shape[1] == in_dim_p, (x.shape, in_layout)
    n_dst, n_src = adj.shape
    assert n_dst <= x.shape[0]
    opad = _round_up(out_dim, 128)
    HO = n_heads * opad

    src_chunk_max, vmem_limit = _tpu_tiling_budget()
    dst_tile = _round_up(n_dst, 16) if n_dst <= DST_TILE_MAX else DST_TILE_MAX
    src_chunk = _round_up(n_src, 16) if n_src <= src_chunk_max else src_chunk_max
    n_dst_p = _round_up(n_dst, dst_tile)
    n_src_p = _round_up(n_src, src_chunk)
    x_rows_p = max(n_dst_p, n_src_p)

    if x.dtype != jnp.bfloat16:
        x = x.astype(jnp.bfloat16)
    if adj.dtype != jnp.int8:
        adj = adj.astype(jnp.int8)      # sampling pipeline should hand us int8 directly
    if x.shape[0] != x_rows_p:
        x = jnp.pad(x, ((0, x_rows_p - x.shape[0]), (0, 0)))
    if adj.shape != (n_dst_p, n_src_p):
        adj = jnp.pad(adj, ((0, n_dst_p - n_dst), (0, n_src_p - n_src)))

    wcat, bias_arr = _prepare_layer(w, attn_l, attn_r, bias, head_mean, in_layout)

    out_cols = opad if head_mean else HO
    out_dtype = jnp.float32 if head_mean else jnp.bfloat16  # hidden layers stay bf16

    kernel = _make_gat_kernel(n_heads, opad, apply_elu, head_mean)
    grid = (n_dst_p // dst_tile, n_src_p // src_chunk)

    out = pl.pallas_call(
        kernel,
        out_shape=jax.ShapeDtypeStruct((n_dst_p, out_cols), out_dtype),
        grid_spec=pltpu.PrefetchScalarGridSpec(
            num_scalar_prefetch=0,
            grid=grid,
            in_specs=[
                pl.BlockSpec((dst_tile, in_dim_p), lambda i, k: (i, 0)),   # x (dst rows)
                pl.BlockSpec((src_chunk, in_dim_p), lambda i, k: (k, 0)),  # x (src rows)
                pl.BlockSpec((dst_tile, src_chunk), lambda i, k: (i, k)),  # adjacency (int8)
                pl.BlockSpec((in_dim_p, HO + 128), lambda i, k: (0, 0)),   # packed weights
                pl.BlockSpec((1, out_cols), lambda i, k: (0, 0)),          # packed bias
            ],
            out_specs=pl.BlockSpec((dst_tile, out_cols), lambda i, k: (i, 0)),
            scratch_shapes=[
                pltpu.VMEM((dst_tile, 128), jnp.float32),            # dst logits (er)
                pltpu.VMEM((n_heads, dst_tile, 1), jnp.float32),     # running max
                pltpu.VMEM((n_heads, dst_tile, 1), jnp.float32),     # running denom
                pltpu.VMEM((n_heads, dst_tile, opad), jnp.float32),  # running numerator
            ]),
        compiler_params=pltpu.CompilerParams(
            dimension_semantics=("parallel", "arbitrary"),
            vmem_limit_bytes=vmem_limit),
    )(x, x, adj, wcat, bias_arr)

    if n_dst_p != n_dst:
        out = out[:n_dst]
    out_layout = (1, out_dim, opad) if head_mean else (n_heads, out_dim, opad)
    return out, out_layout


# ----------------------------------------------------------------------------
# SPGAT forward (glue in plain JAX, hot path in the fused Pallas kernel above)
# ----------------------------------------------------------------------------
def init_spgat_params(key, fan_out, in_feats, n_hidden, n_classes, heads):
    n_layers = len(fan_out)
    params = []
    prev = in_feats
    for l in range(n_layers):
        out = n_hidden if l < n_layers - 1 else n_classes
        h = heads[l]
        key, k1, k2, k3, k4 = jax.random.split(key, 5)
        w = jax.random.normal(k1, (h, prev, out), jnp.float32) / jnp.sqrt(float(prev))
        al = jax.random.normal(k2, (h, 1, out), jnp.float32) * 0.1
        ar = jax.random.normal(k3, (h, 1, out), jnp.float32) * 0.1
        b = jax.random.normal(k4, (h, 1, out), jnp.float32) * 0.01
        params.append((w, al, ar, b))
        prev = out * h
    return params


def spgat_forward(params, adjs, feats):
    """Hidden layers: ELU + head-flatten (lane-dense); last layer: head-mean."""
    n_layers = len(params)
    h = feats.astype(jnp.bfloat16)
    layout = (1, feats.shape[1], feats.shape[1])
    for l, ((w, al, ar, b), adj) in enumerate(zip(params, adjs)):
        last = (l == n_layers - 1)
        h, layout = gat_conv_pallas(h, adj, w, al, ar, b,
                                    apply_elu=not last, head_mean=last,
                                    in_layout=layout)
    return h[:, :layout[1]].astype(jnp.float32)   # strip last layer's lane padding


# ----------------------------------------------------------------------------
# References for correctness checking.
# ----------------------------------------------------------------------------
def _elu(x):
    return jnp.where(x > 0.0, x, jnp.exp(jnp.minimum(x, 0.0)) - 1.0)


def _gat_conv_ref_bf16(x, adj, w, al, ar, b, apply_elu, head_mean, in_layout):
    """Mirrors the kernel's exact packed/bf16 math (exact division instead of vrcp)."""
    n_heads, _, out_dim = w.shape
    opad = _round_up(out_dim, 128)
    HO = n_heads * opad
    n_dst = adj.shape[0]
    wcat, bias_arr = _prepare_layer(w, al, ar, b, head_mean, in_layout)
    proj = jnp.dot(x.astype(jnp.bfloat16), wcat, preferred_element_type=jnp.float32)
    feat = proj[:, :HO].astype(jnp.bfloat16)
    er = proj[:n_dst, HO:HO + n_heads]
    el_t = proj[:, HO + n_heads:HO + 2 * n_heads].T
    mask = adj != 0
    outs = []
    for h in range(n_heads):
        e = er[:, h:h + 1] + el_t[h:h + 1, :]
        e = jnp.maximum(e, 0.2 * e)
        e = jnp.where(mask, e, -1e30)
        p = jnp.exp(e - jnp.max(e, axis=-1, keepdims=True))
        p = jnp.where(mask, p, 0.0)
        denom = jnp.maximum(jnp.sum(p, axis=-1, keepdims=True), 1e-20)
        outs.append(jnp.dot((p / denom).astype(jnp.bfloat16),
                            feat[:, h * opad:(h + 1) * opad],
                            preferred_element_type=jnp.float32))
    if head_mean:
        out = sum(outs) * (1.0 / n_heads) + bias_arr
        layout, dtype = (1, out_dim, opad), jnp.float32
    else:
        out = jnp.concatenate(outs, axis=-1) + bias_arr
        layout, dtype = (n_heads, out_dim, opad), jnp.bfloat16
    if apply_elu:
        out = _elu(out)
    return out.astype(dtype), layout


def _gat_conv_ref_f32(x, adj, w, al, ar, b, apply_elu, head_mean):
    """Full-precision standard GAT formula (PyTorch/DGL semantics)."""
    n_dst = adj.shape[0]
    feat = jnp.einsum("ni,hio->hno", x, w, precision=lax.Precision.HIGHEST)
    el = jnp.sum(feat * al, axis=-1)                       # (H, n_src)
    er = jnp.sum(feat[:, :n_dst, :] * ar, axis=-1)         # (H, n_dst)
    e = er[:, :, None] + el[:, None, :]
    e = jnp.where(e >= 0.0, e, 0.2 * e)
    mask = adj[None] != 0
    e = jnp.where(mask, e, -1e30)
    p = jnp.exp(e - jnp.max(e, axis=-1, keepdims=True))
    p = jnp.where(mask, p, 0.0)
    attn = p / jnp.maximum(jnp.sum(p, axis=-1, keepdims=True), 1e-20)
    out = jnp.einsum("hds,hso->hdo", attn, feat, precision=lax.Precision.HIGHEST) + b
    if apply_elu:
        out = _elu(out)
    out = jnp.transpose(out, (1, 0, 2))                    # (n_dst, H, out)
    return jnp.mean(out, axis=1) if head_mean else out.reshape(out.shape[0], -1)


def _spgat_ref_bf16(params, adjs, feats):
    n_layers = len(params)
    h = feats
    layout = (1, feats.shape[1], feats.shape[1])
    for l, ((w, al, ar, b), adj) in enumerate(zip(params, adjs)):
        last = (l == n_layers - 1)
        h, layout = _gat_conv_ref_bf16(h, adj, w, al, ar, b, not last, last, layout)
    return h[:, :layout[1]].astype(jnp.float32)


def _spgat_ref_f32(params, adjs, feats):
    n_layers = len(params)
    h = feats
    for l, ((w, al, ar, b), adj) in enumerate(zip(params, adjs)):
        last = (l == n_layers - 1)
        h = _gat_conv_ref_f32(h, adj, w, al, ar, b, not last, last)
    return h


# ----------------------------------------------------------------------------
if __name__ == "__main__":
    key = jax.random.PRNGKey(0)

    # args: fan_out=[5,5] -> 2 layers, input_dim=32, num_hidden=32, num_classes=16, heads=[2,2]
    fan_out = [5, 5]
    in_feats, n_hidden, n_classes = 32, 32, 16
    heads = [2, 2]

    # sampled block sizes: layer-0 block (32 dst <- 64 src), layer-1 block (16 dst <- 32 src)
    n_src0, n_dst0, n_dst1 = 64, 32, 16

    k_feat, k_adj0, k_adj1, k_param = jax.random.split(key, 4)
    x = jax.random.normal(k_feat, (n_src0, in_feats), jnp.float32)

    def make_adj(k, n_dst, n_src):
        adj = jax.random.uniform(k, (n_dst, n_src)) < 0.3
        diag = jnp.zeros((n_dst, n_src), bool).at[
            jnp.arange(n_dst), jnp.arange(n_dst)].set(True)   # every dst has a self-edge
        return jnp.logical_or(adj, diag).astype(jnp.int8)     # int8 mask, no f32 adjacency

    adj0 = make_adj(k_adj0, n_dst0, n_src0)
    adj1 = make_adj(k_adj1, n_dst1, n_dst0)

    params = init_spgat_params(k_param, fan_out, in_feats, n_hidden, n_classes, heads)

    out = jax.block_until_ready(spgat_forward(params, [adj0, adj1], x))

    ref_bf16 = _spgat_ref_bf16(params, [adj0, adj1], x)
    ref_f32 = _spgat_ref_f32(params, [adj0, adj1], x)

    assert out.shape == (n_dst1, n_classes), out.shape
    assert bool(jnp.all(jnp.isfinite(out)))
    # Tight check against a reference implementing the identical packed/bf16 math.
    assert bool(jnp.allclose(out, ref_bf16, rtol=2e-2, atol=2e-2)), (
        float(jnp.max(jnp.abs(out - ref_bf16))))
    # Looser semantic check against the full-precision f32 GAT formula.
    assert bool(jnp.allclose(out, ref_f32, rtol=1e-1, atol=1e-1)), (
        float(jnp.max(jnp.abs(out - ref_f32))))

    print("KERNEL_OK")
</pallas_src>

<mosaic_0001>
module attributes {stable_mosaic.version = 11 : i64} {
  func.func @kernel(%arg0: i32, %arg1: i32, %arg2: memref<32x32xbf16, #tpu.memory_space<vmem>>, %arg3: memref<64x32xbf16, #tpu.memory_space<vmem>>, %arg4: memref<32x64xi8, #tpu.memory_space<vmem>>, %arg5: memref<32x384xbf16, #tpu.memory_space<vmem>>, %arg6: memref<1x256xf32, #tpu.memory_space<vmem>>, %arg7: memref<32x256xbf16, #tpu.memory_space<vmem>>, %arg8: memref<32x128xf32, #tpu.memory_space<vmem>>, %arg9: memref<2x32x1xf32, #tpu.memory_space<vmem>>, %arg10: memref<2x32x1xf32, #tpu.memory_space<vmem>>, %arg11: memref<2x32x128xf32, #tpu.memory_space<vmem>>) attributes {dimension_semantics = [#tpu.dimension_semantics<parallel>, #tpu.dimension_semantics<arbitrary>], iteration_bounds = array<i64: 1, 1>, scalar_prefetch = 0 : i64, scratch_operands = 4 : i64, tpu.core_type = #tpu.core_type<tc>, window_params = [{transform_indices = @transform_0, window_bounds = array<i64: 32, 32>}, {transform_indices = @transform_1, window_bounds = array<i64: 64, 32>}, {transform_indices = @transform_2, window_bounds = array<i64: 32, 64>}, {pipeline_mode = #tpu.pipeline_mode<synchronous>, transform_indices = @transform_3, window_bounds = array<i64: 32, 384>}, {pipeline_mode = #tpu.pipeline_mode<synchronous>, transform_indices = @transform_4, window_bounds = array<i64: 1, 256>}, {transform_indices = @transform_5, window_bounds = array<i64: 32, 256>}]} {
    %c0_i32 = arith.constant 0 : i32
    %0 = arith.cmpi eq, %arg1, %c0_i32 : i32
    %1 = arith.extui %0 : i1 to i32
    %c0_i32_0 = arith.constant 0 : i32
    %2 = arith.cmpi ne, %1, %c0_i32_0 : i32
    scf.if %2 {
      %c0_59 = arith.constant 0 : index
      %c0_60 = arith.constant 0 : index
      %106 = vector.load %arg2[%c0_59, %c0_60] : memref<32x32xbf16, #tpu.memory_space<vmem>>, vector<32x32xbf16>
      %c0_61 = arith.constant 0 : index
      %c256 = arith.constant 256 : index
      %107 = vector.load %arg5[%c0_61, %c256] : memref<32x384xbf16, #tpu.memory_space<vmem>>, vector<32x128xbf16>
      %cst_62 = arith.constant dense<0.000000e+00> : vector<32x128xf32>
      %108 = tpu.matmul %106, %107, %cst_62 {dimension_numbers = #tpu.dot_dimension_numbers<[1], [0], [0], [1], [0, 0, 1, 1], [], []>} : vector<32x32xbf16>, vector<32x128xbf16>, vector<32x128xf32> -> vector<32x128xf32>
      %c0_63 = arith.constant 0 : index
      %c0_64 = arith.constant 0 : index
      %109 = vector.load %arg8[%c0_63, %c0_64] : memref<32x128xf32, #tpu.memory_space<vmem>>, vector<32x128xf32>
      tpu.vector_store %arg8[%c0_63, %c0_64], %108 {strides = array<i32>} : memref<32x128xf32, #tpu.memory_space<vmem>>, vector<32x128xf32>,
      %cst_65 = arith.constant -1.000000e+30 : f32
      %110 = vector.broadcast %cst_65 : f32 to vector<2x32x1xf32>
      %c0_66 = arith.constant 0 : index
      %c0_67 = arith.constant 0 : index
      %c0_68 = arith.constant 0 : index
      %111 = vector.load %arg9[%c0_66, %c0_67, %c0_68] : memref<2x32x1xf32, #tpu.memory_space<vmem>>, vector<2x32x1xf32>
      tpu.vector_store %arg9[%c0_66, %c0_67, %c0_68], %110 {strides = array<i32>} : memref<2x32x1xf32, #tpu.memory_space<vmem>>, vector<2x32x1xf32>,
      %cst_69 = arith.constant 0.000000e+00 : f32
      %112 = vector.broadcast %cst_69 : f32 to vector<2x32x1xf32>
      %c0_70 = arith.constant 0 : index
      %c0_71 = arith.constant 0 : index
      %c0_72 = arith.constant 0 : index
      %113 = vector.load %arg10[%c0_70, %c0_71, %c0_72] : memref<2x32x1xf32, #tpu.memory_space<vmem>>, vector<2x32x1xf32>
      tpu.vector_store %arg10[%c0_70, %c0_71, %c0_72], %112 {strides = array<i32>} : memref<2x32x1xf32, #tpu.memory_space<vmem>>, vector<2x32x1xf32>,
      %cst_73 = arith.constant 0.000000e+00 : f32
      %114 = vector.broadcast %cst_73 : f32 to vector<2x32x128xf32>
      %c0_74 = arith.constant 0 : index
      %c0_75 = arith.constant 0 : index
      %c0_76 = arith.constant 0 : index
      %115 = vector.load %arg11[%c0_74, %c0_75, %c0_76] : memref<2x32x128xf32, #tpu.memory_space<vmem>>, vector<2x32x128xf32>
      tpu.vector_store %arg11[%c0_74, %c0_75, %c0_76], %114 {strides = array<i32>} : memref<2x32x128xf32, #tpu.memory_space<vmem>>, vector<2x32x128xf32>,
    } else {
    }
    %c0 = arith.constant 0 : index
    %c0_1 = arith.constant 0 : index
    %3 = vector.load %arg3[%c0, %c0_1] : memref<64x32xbf16, #tpu.memory_space<vmem>>, vector<64x32xbf16>
    %c0_2 = arith.constant 0 : index
    %c0_3 = arith.constant 0 : index
    %4 = vector.load %arg5[%c0_2, %c0_3] : memref<32x384xbf16, #tpu.memory_space<vmem>>, vector<32x384xbf16>
    %cst = arith.constant dense<0.000000e+00> : vector<64x384xf32>
    %5 = tpu.matmul %3, %4, %cst {dimension_numbers = #tpu.dot_dimension_numbers<[1], [0], [0], [1], [0, 0, 1, 1], [], []>} : vector<64x32xbf16>, vector<32x384xbf16>, vector<64x384xf32> -> vector<64x384xf32>
    %6 = vector.extract_strided_slice %5 {offsets = [0, 0], sizes = [64, 256], strides = [1, 1]} : vector<64x384xf32> to vector<64x256xf32>
    %7 = arith.truncf %6 : vector<64x256xf32> to vector<64x256xbf16>
    %8 = vector.extract_strided_slice %5 {offsets = [0, 256], sizes = [64, 128], strides = [1, 1]} : vector<64x384xf32> to vector<64x128xf32>
    %9 = tpu.transpose %8, [1, 0] : vector<64x128xf32> -> vector<128x64xf32>
    %c0_4 = arith.constant 0 : index
    %c0_5 = arith.constant 0 : index
    %10 = vector.load %arg4[%c0_4, %c0_5] : memref<32x64xi8, #tpu.memory_space<vmem>>, vector<32x64xi8>
    %c0_i8 = arith.constant 0 : i8
    %11 = vector.broadcast %c0_i8 : i8 to vector<32x64xi8>
    %12 = arith.cmpi ne, %10, %11 : vector<32x64xi8>
    %c0_6 = arith.constant 0 : index
    %c0_7 = arith.constant 0 : index
    %13 = vector.load %arg8[%c0_6, %c0_7] : memref<32x128xf32, #tpu.memory_space<vmem>>, vector<32x1xf32>
    %14 = vector.extract_strided_slice %9 {offsets = [2, 0], sizes = [1, 64], strides = [1, 1]} : vector<128x64xf32> to vector<1x64xf32>
    %15 = vector.broadcast %13 : vector<32x1xf32> to vector<32x64xf32>
    %16 = vector.broadcast %14 : vector<1x64xf32> to vector<32x64xf32>
    %17 = arith.addf %15, %16 : vector<32x64xf32>
    %cst_8 = arith.constant 2.000000e-01 : f32
    %18 = vector.broadcast %cst_8 : f32 to vector<32x64xf32>
    %19 = arith.mulf %18, %17 : vector<32x64xf32>
    %20 = arith.maximumf %17, %19 : vector<32x64xf32>
    %cst_9 = arith.constant -1.000000e+30 : f32
    %21 = vector.broadcast %cst_9 : f32 to vector<32x64xf32>
    %22 = arith.select %12, %20, %21 : vector<32x64xi1>, vector<32x64xf32>
    %c0_10 = arith.constant 0 : index
    %c0_11 = arith.constant 0 : index
    %c0_12 = arith.constant 0 : index
    %23 = vector.load %arg9[%c0_10, %c0_11, %c0_12] : memref<2x32x1xf32, #tpu.memory_space<vmem>>, vector<1x32x1xf32>
    %24 = vector.shape_cast %23 : vector<1x32x1xf32> to vector<32x1xf32>
    %cst_13 = arith.constant dense<0xFF800000> : vector<32xf32>
    %25 = vector.multi_reduction <maximumf>, %22, %cst_13 [1] : vector<32x64xf32> to vector<32xf32>
    %26 = vector.shape_cast %25 : vector<32xf32> to vector<32x1xf32>
    %27 = arith.maximumf %24, %26 : vector<32x1xf32>
    %28 = arith.subf %24, %27 : vector<32x1xf32>
    %29 = math.exp %28 : vector<32x1xf32>
    %30 = vector.broadcast %27 : vector<32x1xf32> to vector<32x64xf32>
    %31 = arith.subf %22, %30 : vector<32x64xf32>
    %32 = math.exp %31 : vector<32x64xf32>
    %cst_14 = arith.constant 0.000000e+00 : f32
    %33 = vector.broadcast %cst_14 : f32 to vector<32x64xf32>
    %34 = arith.select %12, %32, %33 : vector<32x64xi1>, vector<32x64xf32>
    %c0_15 = arith.constant 0 : index
    %c0_16 = arith.constant 0 : index
    %c0_17 = arith.constant 0 : index
    %35 = vector.load %arg10[%c0_15, %c0_16, %c0_17] : memref<2x32x1xf32, #tpu.memory_space<vmem>>, vector<1x32x1xf32>
    %36 = vector.shape_cast %35 : vector<1x32x1xf32> to vector<32x1xf32>
    %37 = arith.mulf %29, %36 : vector<32x1xf32>
    %cst_18 = arith.constant dense<0.000000e+00> : vector<32xf32>
    %38 = vector.multi_reduction <add>, %34, %cst_18 [1] : vector<32x64xf32> to vector<32xf32>
    %39 = vector.shape_cast %38 : vector<32xf32> to vector<32x1xf32>
    %40 = arith.addf %37, %39 : vector<32x1xf32>
    %c0_19 = arith.constant 0 : index
    %c0_20 = arith.constant 0 : index
    %c0_21 = arith.constant 0 : index
    %41 = vector.load %arg10[%c0_19, %c0_20, %c0_21] : memref<2x32x1xf32, #tpu.memory_space<vmem>>, vector<1x32x1xf32>
    %42 = vector.shape_cast %41 : vector<1x32x1xf32> to vector<32x1xf32>
    %43 = vector.shape_cast %40 : vector<32x1xf32> to vector<1x32x1xf32>
    tpu.vector_store %arg10[%c0_19, %c0_20, %c0_21], %43 {strides = array<i32>} : memref<2x32x1xf32, #tpu.memory_space<vmem>>, vector<1x32x1xf32>,
    %c0_22 = arith.constant 0 : index
    %c0_23 = arith.constant 0 : index
    %c0_24 = arith.constant 0 : index
    %44 = vector.load %arg11[%c0_22, %c0_23, %c0_24] : memref<2x32x128xf32, #tpu.memory_space<vmem>>, vector<1x32x128xf32>
    %45 = vector.shape_cast %44 : vector<1x32x128xf32> to vector<32x128xf32>
    %46 = vector.broadcast %29 : vector<32x1xf32> to vector<32x128xf32>
    %47 = arith.mulf %46, %45 : vector<32x128xf32>
    %48 = arith.truncf %34 : vector<32x64xf32> to vector<32x64xbf16>
    %49 = vector.extract_strided_slice %7 {offsets = [0, 0], sizes = [64, 128], strides = [1, 1]} : vector<64x256xbf16> to vector<64x128xbf16>
    %cst_25 = arith.constant dense<0.000000e+00> : vector<32x128xf32>
    %50 = tpu.matmul %48, %49, %cst_25 {dimension_numbers = #tpu.dot_dimension_numbers<[1], [0], [0], [1], [0, 0, 1, 1], [], []>} : vector<32x64xbf16>, vector<64x128xbf16>, vector<32x128xf32> -> vector<32x128xf32>
    %51 = arith.addf %47, %50 : vector<32x128xf32>
    %c0_26 = arith.constant 0 : index
    %c0_27 = arith.constant 0 : index
    %c0_28 = arith.constant 0 : index
    %52 = vector.load %arg11[%c0_26, %c0_27, %c0_28] : memref<2x32x128xf32, #tpu.memory_space<vmem>>, vector<1x32x128xf32>
    %53 = vector.shape_cast %52 : vector<1x32x128xf32> to vector<32x128xf32>
    %54 = vector.shape_cast %51 : vector<32x128xf32> to vector<1x32x128xf32>
    tpu.vector_store %arg11[%c0_26, %c0_27, %c0_28], %54 {strides = array<i32>} : memref<2x32x128xf32, #tpu.memory_space<vmem>>, vector<1x32x128xf32>,
    %c0_29 = arith.constant 0 : index
    %c0_30 = arith.constant 0 : index
    %c0_31 = arith.constant 0 : index
    %55 = vector.load %arg9[%c0_29, %c0_30, %c0_31] : memref<2x32x1xf32, #tpu.memory_space<vmem>>, vector<1x32x1xf32>
    %56 = vector.shape_cast %55 : vector<1x32x1xf32> to vector<32x1xf32>
    %57 = vector.shape_cast %27 : vector<32x1xf32> to vector<1x32x1xf32>
    tpu.vector_store %arg9[%c0_29, %c0_30, %c0_31], %57 {strides = array<i32>} : memref<2x32x1xf32, #tpu.memory_space<vmem>>, vector<1x32x1xf32>,
    %c0_32 = arith.constant 0 : index
    %c1 = arith.constant 1 : index
    %58 = vector.load %arg8[%c0_32, %c1] : memref<32x128xf32, #tpu.memory_space<vmem>>, vector<32x1xf32>
    %59 = vector.extract_strided_slice %9 {offsets = [3, 0], sizes = [1, 64], strides = [1, 1]} : vector<128x64xf32> to vector<1x64xf32>
    %60 = vector.broadcast %58 : vector<32x1xf32> to vector<32x64xf32>
    %61 = vector.broadcast %59 : vector<1x64xf32> to vector<32x64xf32>
    %62 = arith.addf %60, %61 : vector<32x64xf32>
    %cst_33 = arith.constant 2.000000e-01 : f32
    %63 = vector.broadcast %cst_33 : f32 to vector<32x64xf32>
    %64 = arith.mulf %63, %62 : vector<32x64xf32>
    %65 = arith.maximumf %62, %64 : vector<32x64xf32>
    %cst_34 = arith.constant -1.000000e+30 : f32
    %66 = vector.broadcast %cst_34 : f32 to vector<32x64xf32>
    %67 = arith.select %12, %65, %66 : vector<32x64xi1>, vector<32x64xf32>
    %c1_35 = arith.constant 1 : index
    %c0_36 = arith.constant 0 : index
    %c0_37 = arith.constant 0 : index
    %68 = vector.load %arg9[%c1_35, %c0_36, %c0_37] : memref<2x32x1xf32, #tpu.memory_space<vmem>>, vector<1x32x1xf32>
    %69 = vector.shape_cast %68 : vector<1x32x1xf32> to vector<32x1xf32>
    %cst_38 = arith.constant dense<0xFF800000> : vector<32xf32>
    %70 = vector.multi_reduction <maximumf>, %67, %cst_38 [1] : vector<32x64xf32> to vector<32xf32>
    %71 = vector.shape_cast %70 : vector<32xf32> to vector<32x1xf32>
    %72 = arith.maximumf %69, %71 : vector<32x1xf32>
    %73 = arith.subf %69, %72 : vector<32x1xf32>
    %74 = math.exp %73 : vector<32x1xf32>
    %75 = vector.broadcast %72 : vector<32x1xf32> to vector<32x64xf32>
    %76 = arith.subf %67, %75 : vector<32x64xf32>
    %77 = math.exp %76 : vector<32x64xf32>
    %cst_39 = arith.constant 0.000000e+00 : f32
    %78 = vector.broadcast %cst_39 : f32 to vector<32x64xf32>
    %79 = arith.select %12, %77, %78 : vector<32x64xi1>, vector<32x64xf32>
    %c1_40 = arith.constant 1 : index
    %c0_41 = arith.constant 0 : index
    %c0_42 = arith.constant 0 : index
    %80 = vector.load %arg10[%c1_40, %c0_41, %c0_42] : memref<2x32x1xf32, #tpu.memory_space<vmem>>, vector<1x32x1xf32>
    %81 = vector.shape_cast %80 : vector<1x32x1xf32> to vector<32x1xf32>
    %82 = arith.mulf %74, %81 : vector<32x1xf32>
    %cst_43 = arith.constant dense<0.000000e+00> : vector<32xf32>
    %83 = vector.multi_reduction <add>, %79, %cst_43 [1] : vector<32x64xf32> to vector<32xf32>
    %84 = vector.shape_cast %83 : vector<32xf32> to vector<32x1xf32>
    %85 = arith.addf %82, %84 : vector<32x1xf32>
    %c1_44 = arith.constant 1 : index
    %c0_45 = arith.constant 0 : index
    %c0_46 = arith.constant 0 : index
    %86 = vector.load %arg10[%c1_44, %c0_45, %c0_46] : memref<2x32x1xf32, #tpu.memory_space<vmem>>, vector<1x32x1xf32>
    %87 = vector.shape_cast %86 : vector<1x32x1xf32> to vector<32x1xf32>
    %88 = vector.shape_cast %85 : vector<32x1xf32> to vector<1x32x1xf32>
    tpu.vector_store %arg10[%c1_44, %c0_45, %c0_46], %88 {strides = array<i32>} : memref<2x32x1xf32, #tpu.memory_space<vmem>>, vector<1x32x1xf32>,
    %c1_47 = arith.constant 1 : index
    %c0_48 = arith.constant 0 : index
    %c0_49 = arith.constant 0 : index
    %89 = vector.load %arg11[%c1_47, %c0_48, %c0_49] : memref<2x32x128xf32, #tpu.memory_space<vmem>>, vector<1x32x128xf32>
    %90 = vector.shape_cast %89 : vector<1x32x128xf32> to vector<32x128xf32>
    %91 = vector.broadcast %74 : vector<32x1xf32> to vector<32x128xf32>
    %92 = arith.mulf %91, %90 : vector<32x128xf32>
    %93 = arith.truncf %79 : vector<32x64xf32> to vector<32x64xbf16>
    %94 = vector.extract_strided_slice %7 {offsets = [0, 128], sizes = [64, 128], strides = [1, 1]} : vector<64x256xbf16> to vector<64x128xbf16>
    %cst_50 = arith.constant dense<0.000000e+00> : vector<32x128xf32>
    %95 = tpu.matmul %93, %94, %cst_50 {dimension_numbers = #tpu.dot_dimension_numbers<[1], [0], [0], [1], [0, 0, 1, 1], [], []>} : vector<32x64xbf16>, vector<64x128xbf16>, vector<32x128xf32> -> vector<32x128xf32>
    %96 = arith.addf %92, %95 : vector<32x128xf32>
    %c1_51 = arith.constant 1 : index
    %c0_52 = arith.constant 0 : index
    %c0_53 = arith.constant 0 : index
    %97 = vector.load %arg11[%c1_51, %c0_52, %c0_53] : memref<2x32x128xf32, #tpu.memory_space<vmem>>, vector<1x32x128xf32>
    %98 = vector.shape_cast %97 : vector<1x32x128xf32> to vector<32x128xf32>
    %99 = vector.shape_cast %96 : vector<32x128xf32> to vector<1x32x128xf32>
    tpu.vector_store %arg11[%c1_51, %c0_52, %c0_53], %99 {strides = array<i32>} : memref<2x32x128xf32, #tpu.memory_space<vmem>>, vector<1x32x128xf32>,
    %c1_54 = arith.constant 1 : index
    %c0_55 = arith.constant 0 : index
    %c0_56 = arith.constant 0 : index
    %100 = vector.load %arg9[%c1_54, %c0_55, %c0_56] : memref<2x32x1xf32, #tpu.memory_space<vmem>>, vector<1x32x1xf32>
    %101 = vector.shape_cast %100 : vector<1x32x1xf32> to vector<32x1xf32>
    %102 = vector.shape_cast %72 : vector<32x1xf32> to vector<1x32x1xf32>
    tpu.vector_store %arg9[%c1_54, %c0_55, %c0_56], %102 {strides = array<i32>} : memref<2x32x1xf32, #tpu.memory_space<vmem>>, vector<1x32x1xf32>,
    %c0_i32_57 = arith.constant 0 : i32
    %103 = arith.cmpi eq, %arg1, %c0_i32_57 : i32
    %104 = arith.extui %103 : i1 to i32
    %c0_i32_58 = arith.constant 0 : i32
    %105 = arith.cmpi ne, %104, %c0_i32_58 : i32
    scf.if %105 {
      %c0_59 = arith.constant 0 : index
      %c0_60 = arith.constant 0 : index
      %c0_61 = arith.constant 0 : index
      %106 = vector.load %arg11[%c0_59, %c0_60, %c0_61] : memref<2x32x128xf32, #tpu.memory_space<vmem>>, vector<1x32x128xf32>
      %107 = vector.shape_cast %106 : vector<1x32x128xf32> to vector<32x128xf32>
      %c0_62 = arith.constant 0 : index
      %c0_63 = arith.constant 0 : index
      %c0_64 = arith.constant 0 : index
      %108 = vector.load %arg10[%c0_62, %c0_63, %c0_64] : memref<2x32x1xf32, #tpu.memory_space<vmem>>, vector<1x32x1xf32>
      %109 = vector.shape_cast %108 : vector<1x32x1xf32> to vector<32x1xf32>
      %cst_65 = arith.constant 9.99999968E-21 : f32
      %110 = vector.broadcast %cst_65 : f32 to vector<32x1xf32>
      %111 = arith.maximumf %109, %110 : vector<32x1xf32>
      %112 = tpu.reciprocal %111 {approx = true} : vector<32x1xf32> -> vector<32x1xf32>
      %113 = vector.broadcast %112 : vector<32x1xf32> to vector<32x128xf32>
      %114 = arith.mulf %107, %113 : vector<32x128xf32>
      %c0_66 = arith.constant 0 : index
      %c0_67 = arith.constant 0 : index
      %115 = vector.load %arg6[%c0_66, %c0_67] : memref<1x256xf32, #tpu.memory_space<vmem>>, vector<1x128xf32>
      %116 = vector.broadcast %115 : vector<1x128xf32> to vector<32x128xf32>
      %117 = arith.addf %114, %116 : vector<32x128xf32>
      %cst_68 = arith.constant 0.000000e+00 : f32
      %118 = vector.broadcast %cst_68 : f32 to vector<32x128xf32>
      %119 = arith.cmpf ogt, %117, %118 : vector<32x128xf32>
      %cst_69 = arith.constant 0.000000e+00 : f32
      %120 = vector.broadcast %cst_69 : f32 to vector<32x128xf32>
      %121 = arith.minimumf %117, %120 : vector<32x128xf32>
      %122 = math.exp %121 : vector<32x128xf32>
      %cst_70 = arith.constant 1.000000e+00 : f32
      %123 = vector.broadcast %cst_70 : f32 to vector<32x128xf32>
      %124 = arith.subf %122, %123 : vector<32x128xf32>
      %125 = arith.select %119, %117, %124 : vector<32x128xi1>, vector<32x128xf32>
      %126 = arith.truncf %125 : vector<32x128xf32> to vector<32x128xbf16>
      %c0_71 = arith.constant 0 : index
      %c0_72 = arith.constant 0 : index
      %127 = vector.load %arg7[%c0_71, %c0_72] : memref<32x256xbf16, #tpu.memory_space<vmem>>, vector<32x128xbf16>
      tpu.vector_store %arg7[%c0_71, %c0_72], %126 {strides = array<i32>} : memref<32x256xbf16, #tpu.memory_space<vmem>>, vector<32x128xbf16>,
      %c1_73 = arith.constant 1 : index
      %c0_74 = arith.constant 0 : index
      %c0_75 = arith.constant 0 : index
      %128 = vector.load %arg11[%c1_73, %c0_74, %c0_75] : memref<2x32x128xf32, #tpu.memory_space<vmem>>, vector<1x32x128xf32>
      %129 = vector.shape_cast %128 : vector<1x32x128xf32> to vector<32x128xf32>
      %c1_76 = arith.constant 1 : index
      %c0_77 = arith.constant 0 : index
      %c0_78 = arith.constant 0 : index
      %130 = vector.load %arg10[%c1_76, %c0_77, %c0_78] : memref<2x32x1xf32, #tpu.memory_space<vmem>>, vector<1x32x1xf32>
      %131 = vector.shape_cast %130 : vector<1x32x1xf32> to vector<32x1xf32>
      %cst_79 = arith.constant 9.99999968E-21 : f32
      %132 = vector.broadcast %cst_79 : f32 to vector<32x1xf32>
      %133 = arith.maximumf %131, %132 : vector<32x1xf32>
      %134 = tpu.reciprocal %133 {approx = true} : vector<32x1xf32> -> vector<32x1xf32>
      %135 = vector.broadcast %134 : vector<32x1xf32> to vector<32x128xf32>
      %136 = arith.mulf %129, %135 : vector<32x128xf32>
      %c0_80 = arith.constant 0 : index
      %c128 = arith.constant 128 : index
      %137 = vector.load %arg6[%c0_80, %c128] : memref<1x256xf32, #tpu.memory_space<vmem>>, vector<1x128xf32>
      %138 = vector.broadcast %137 : vector<1x128xf32> to vector<32x128xf32>
      %139 = arith.addf %136, %138 : vector<32x128xf32>
      %cst_81 = arith.constant 0.000000e+00 : f32
      %140 = vector.broadcast %cst_81 : f32 to vector<32x128xf32>
      %141 = arith.cmpf ogt, %139, %140 : vector<32x128xf32>
      %cst_82 = arith.constant 0.000000e+00 : f32
      %142 = vector.broadcast %cst_82 : f32 to vector<32x128xf32>
      %143 = arith.minimumf %139, %142 : vector<32x128xf32>
      %144 = math.exp %143 : vector<32x128xf32>
      %cst_83 = arith.constant 1.000000e+00 : f32
      %145 = vector.broadcast %cst_83 : f32 to vector<32x128xf32>
      %146 = arith.subf %144, %145 : vector<32x128xf32>
      %147 = arith.select %141, %139, %146 : vector<32x128xi1>, vector<32x128xf32>
      %148 = arith.truncf %147 : vector<32x128xf32> to vector<32x128xbf16>
      %c0_84 = arith.constant 0 : index
      %c128_85 = arith.constant 128 : index
      %149 = vector.load %arg7[%c0_84, %c128_85] : memref<32x256xbf16, #tpu.memory_space<vmem>>, vector<32x128xbf16>
      tpu.vector_store %arg7[%c0_84, %c128_85], %148 {strides = array<i32>} : memref<32x256xbf16, #tpu.memory_space<vmem>>, vector<32x128xbf16>,
    } else {
    }
    return
  }
  func.func @transform_0(%arg0: i32, %arg1: i32) -> (i32, i32) {
    %c0_i32 = arith.constant 0 : i32
    %c0_i32_0 = arith.constant 0 : i32
    return %arg0, %c0_i32 : i32, i32
  }
  func.func @transform_1(%arg0: i32, %arg1: i32) -> (i32, i32) {
    %c0_i32 = arith.constant 0 : i32
    %c0_i32_0 = arith.constant 0 : i32
    return %arg1, %c0_i32 : i32, i32
  }
  func.func @transform_2(%arg0: i32, %arg1: i32) -> (i32, i32) {
    %c0_i32 = arith.constant 0 : i32
    return %arg0, %arg1 : i32, i32
  }
  func.func @transform_3(%arg0: i32, %arg1: i32) -> (i32, i32) {
    %c0_i32 = arith.constant 0 : i32
    %c0_i32_0 = arith.constant 0 : i32
    %c0_i32_1 = arith.constant 0 : i32
    return %c0_i32, %c0_i32_0 : i32, i32
  }
  func.func @transform_4(%arg0: i32, %arg1: i32) -> (i32, i32) {
    %c0_i32 = arith.constant 0 : i32
    %c0_i32_0 = arith.constant 0 : i32
    %c0_i32_1 = arith.constant 0 : i32
    return %c0_i32, %c0_i32_0 : i32, i32
  }
  func.func @transform_5(%arg0: i32, %arg1: i32) -> (i32, i32) {
    %c0_i32 = arith.constant 0 : i32
    %c0_i32_0 = arith.constant 0 : i32
    return %arg0, %c0_i32 : i32, i32
  }
}

</mosaic_0001>

<llo_original>
// kernel: tpu_custom_call.1
$region0: #{tpu_custom_call.1}
  #allocation0 [shape = 'u32[]', space=smem, size = 0x4, offset = 0x4, fixed_abs, tag = 'smem constant byte address 0x4 - core index']
  #allocation1 [shape = 'u32[144,128]{1,0:T(1,128)}', space=vmem, size = 0x12000, scoped, tag = 'internal scratch']
  #allocation2 [shape = 'f32[32,128]{1,0:T(8,128)}', space=vmem, size = 0x4000, scoped, tag = 'scratch operand']
  #allocation3 [shape = 'f32[2,32,1]{2,1,0:T(8,128)}', space=vmem, size = 0x8000, scoped, tag = 'scratch operand']
  #allocation4 [shape = 'f32[2,32,1]{2,1,0:T(8,128)}', space=vmem, size = 0x8000, scoped, tag = 'scratch operand']
  #allocation5 [shape = 'f32[2,32,128]{2,1,0:T(8,128)}', space=vmem, size = 0x8000, scoped, tag = 'scratch operand']
  %s0 = inlined_call_operand.vmem [shape: bf16[64,32], index: 0, kind: input, shape index: {}]
  %s1 = inlined_call_operand.vmem [shape: bf16[64,32], index: 1, kind: input, shape index: {}]
  %s2 = inlined_call_operand.vmem [shape: s8[32,64], index: 2, kind: input, shape index: {}]
  %s3 = inlined_call_operand.vmem [shape: bf16[32,384], index: 3, kind: input, shape index: {}]
  %s4 = inlined_call_operand.vmem [shape: f32[1,256], index: 4, kind: input, shape index: {}]
  %s5 = inlined_call_operand.hbm [shape: bf16[32,256], index: 5, kind: output, shape index: {}]
  %s6 = sld [smem:[#allocation0]]
  $region38: #{tpu_custom_call.1} parent=0
    _
  %s8 = ssub.s32 1, %s6
  %s9 = scalar_select 0, %s8, %s6
  $region1: #{tpu_custom_call.1} parent=0
    #allocation6 [shape = 'u8[16384]{0}', space=vmem, size = 0x4000, scoped, tag = 'output window, operand 0, single buffered']
    #allocation7 [shape = 's32[1]{0}', space=sflag, size = 0x4, scoped, tag = 'scoped memory for tpu_custom_call.1']
    %10 = vsyncpa [#allocation7], 0
    // Predicated region
    $region2: #{tpu_custom_call.1} parent=1 // pred_check
      _
    $region3: #{tpu_custom_call.1} parent=1 // pred_check_branch
      %12 = sbr.rel (0) target = $region5
    $region4: #{tpu_custom_call.1} parent=1 // pred_region
      _
    $region5: #{tpu_custom_call.1} parent=1 // pred_fallthru
      _
    // Predicated region
    $region6: #{tpu_custom_call.1} parent=1 // pred_check
      _
    $region7: #{tpu_custom_call.1} parent=1 // pred_check_branch
      %14 = sbr.rel (0) target = $region9
    $region8: #{tpu_custom_call.1} parent=1 // pred_region
      _
    $region9: #{tpu_custom_call.1} parent=1 // pred_fallthru
      _
    // Predicated region
    $region10: #{tpu_custom_call.1} parent=1 // pred_check
      _
    $region11: #{tpu_custom_call.1} parent=1 // pred_check_branch
      %16 = sbr.rel (0) target = $region13
    $region12: #{tpu_custom_call.1} parent=1 // pred_region
      _
    $region13: #{tpu_custom_call.1} parent=1 // pred_fallthru
      _
    // Predicated region
    $region14: #{tpu_custom_call.1} parent=1 // pred_check
      _
    $region15: #{tpu_custom_call.1} parent=1 // pred_check_branch
      %18 = sbr.rel (0) target = $region17
    $region16: #{tpu_custom_call.1} parent=1 // pred_region
      _
    $region17: #{tpu_custom_call.1} parent=1 // pred_fallthru
      _
    // Predicated region
    $region18: #{tpu_custom_call.1} parent=1 // pred_check
      _
    $region19: #{tpu_custom_call.1} parent=1 // pred_check_branch
      %20 = sbr.rel (0) target = $region21
    $region20: #{tpu_custom_call.1} parent=1 // pred_region
      _
    $region21: #{tpu_custom_call.1} parent=1 // pred_fallthru
      _
    %p24 = scmp.eq.s32.totalorder 0, 0
    // Predicated region
    $region22: #{tpu_custom_call.1} parent=1 // pred_check
      %p25 = pneg %p24
    $region23: #{tpu_custom_call.1} parent=1 // pred_check_branch
      %27 = sbr.rel (%p25) target = $region25
    $region24: #{tpu_custom_call.1} parent=1 // pred_region
      %v28 = vld [vmem:[%s0] sm:$0xf]
      %v29 = vld [vmem:[%s0 + $0x4] sm:$0xf]
      %v30 = vld [vmem:[%s0 + $0x8] sm:$0xf]
      %v31 = vld [vmem:[%s0 + $0xc] sm:$0xf]
      %v32 = vld [vmem:[%s3 + $0x8] sm:$0xf]
      %v33 = vld [vmem:[%s3 + $0x14] sm:$0xf]
      %v34 = vld [vmem:[%s3 + $0x20] sm:$0xf]
      %v35 = vld [vmem:[%s3 + $0x2c] sm:$0xf]
      %v40 = vunpack.c.l.b16 %v28
      %v41 = vunpack.c.l.b16 %v29
      %v42 = vunpack.c.l.b16 %v30
      %v43 = vunpack.c.l.b16 %v31
      %v44 = vpack.c.b16 %v41, %v40
      %v45 = vpack.c.b16 %v43, %v42
      %v50 = vunpack.c.l.b16 %v32
      %v51 = vunpack.c.l.b16 %v33
      %v52 = vunpack.c.l.b16 %v34
      %v53 = vunpack.c.l.b16 %v35
      %v54 = vpack.c.b16 %v51, %v50
      %v55 = vpack.c.b16 %v53, %v52
      %vm58 = vcmask 261120
      %v60 = vsel %vm58, %v44, 0
      %v63 = vsel %vm58, %v45, 0
      %65 = vmatprep.subr.bf16.mxu0 0
      %66 = vmatpush1.bf16.msra.mxu0 0
      %67 = vmatprep.subr.bf16.mxu0 0
      %68 = vmatpush1.bf16.msra.mxu0 0
      %69 = vmatprep.subr.bf16.mxu0 0
      %70 = vmatpush1.bf16.msra.mxu0 0
      %71 = vmatprep.subr.bf16.mxu0 0
      %72 = vmatpush1.bf16.msra.mxu0 0
      %73 = vmatprep.subr.bf16.mxu0 0
      %74 = vmatpush1.bf16.msra.mxu0 0
      %75 = vmatprep.subr.bf16.mxu0 0
      %76 = vmatpush1.bf16.msra.mxu0 0
      %77 = vmatprep.subr.bf16.mxu0 0
      %78 = vmatpush1.bf16.msra.mxu0 %v55
      %79 = vmatprep.subr.bf16.mxu0 0
      %80 = vmatpush1.bf16.msra.mxu0 %v54
      %81 = vmatprep.subr.bf16.mxu0 0
      %82 = vmatpush2.bf16.msra.mxu0 0
      %83 = vmatprep.subr.bf16.mxu0 0
      %84 = vmatpush2.bf16.msra.mxu0 0
      %85 = vmatprep.subr.bf16.mxu0 0
      %86 = vmatpush2.bf16.msra.mxu0 0
      %87 = vmatprep.subr.bf16.mxu0 0
      %88 = vmatpush2.bf16.msra.mxu0 0
      %89 = vmatprep.subr.bf16.mxu0 0
      %90 = vmatpush2.bf16.msra.mxu0 0
      %91 = vmatprep.subr.bf16.mxu0 0
      %92 = vmatpush2.bf16.msra.mxu0 0
      %93 = vmatprep.subr.bf16.mxu0 0
      %94 = vmatpush2.bf16.msra.mxu0 0
      %95 = vmatprep.subr.bf16.mxu0 0
      %96 = vmatpush2.bf16.msra.mxu0 0
      %97 = vmatprep.mubr.bf16.mxu0 0
      %98 = vmatmul.mubr.bf16.gmra.mxu0 %v60
      %v99 = vpop.f32.mrf.mxu0
      %v100 = vadd.f32 0.0, %v99
      %v101 = vpop.f32.mrf.mxu0
      %v102 = vpop.f32.mrf.mxu0
      %v103 = vadd.f32 0.0, %v102
      %v104 = vpop.f32.mrf.mxu0
      %105 = vmatprep.mubr.bf16.mxu0 0
      %106 = vmatmul.mubr.bf16.gmra.mxu0 %v63
      %v107 = vpop.f32.mrf.mxu0
      %v108 = vadd.f32 0.0, %v107
      %v109 = vpop.f32.mrf.mxu0
      %v110 = vpop.f32.mrf.mxu0
      %v111 = vadd.f32 0.0, %v110
      %v112 = vpop.f32.mrf.mxu0
      %113 = vdwg.mxu0
      %114 = vst [vmem:[#allocation2] sm:$0xff] %v100
      %115 = vst [vmem:[#allocation2 + $0x8] sm:$0xff] %v103
      %116 = vst [vmem:[#allocation2 + $0x10] sm:$0xff] %v108
      %117 = vst [vmem:[#allocation2 + $0x18] sm:$0xff] %v111
      %vm118 = vcmask 7168
      %119 = vst.msk [vmem:[#allocation3] sm:$0xff] %vm118, -1e+30
      %120 = vst.msk [vmem:[#allocation3 + $0x8] sm:$0xff] %vm118, -1e+30
      %121 = vst.msk [vmem:[#allocation3 + $0x10] sm:$0xff] %vm118, -1e+30
      %122 = vst.msk [vmem:[#allocation3 + $0x18] sm:$0xff] %vm118, -1e+30
      %123 = vst.msk [vmem:[#allocation3 + $0x20] sm:$0xff] %vm118, -1e+30
      %124 = vst.msk [vmem:[#allocation3 + $0x28] sm:$0xff] %vm118, -1e+30
      %125 = vst.msk [vmem:[#allocation3 + $0x30] sm:$0xff] %vm118, -1e+30
      %126 = vst.msk [vmem:[#allocation3 + $0x38] sm:$0xff] %vm118, -1e+30
      %127 = vst.msk [vmem:[#allocation4] sm:$0xff] %vm118, 0.0
      %128 = vst.msk [vmem:[#allocation4 + $0x8] sm:$0xff] %vm118, 0.0
      %129 = vst.msk [vmem:[#allocation4 + $0x10] sm:$0xff] %vm118, 0.0
      %130 = vst.msk [vmem:[#allocation4 + $0x18] sm:$0xff] %vm118, 0.0
      %131 = vst.msk [vmem:[#allocation4 + $0x20] sm:$0xff] %vm118, 0.0
      %132 = vst.msk [vmem:[#allocation4 + $0x28] sm:$0xff] %vm118, 0.0
      %133 = vst.msk [vmem:[#allocation4 + $0x30] sm:$0xff] %vm118, 0.0
      %134 = vst.msk [vmem:[#allocation4 + $0x38] sm:$0xff] %vm118, 0.0
      %135 = vst [vmem:[#allocation5] sm:$0xff] 0.0
      %136 = vst [vmem:[#allocation5 + $0x8] sm:$0xff] 0.0
      %137 = vst [vmem:[#allocation5 + $0x10] sm:$0xff] 0.0
      %138 = vst [vmem:[#allocation5 + $0x18] sm:$0xff] 0.0
      %139 = vst [vmem:[#allocation5 + $0x20] sm:$0xff] 0.0
      %140 = vst [vmem:[#allocation5 + $0x28] sm:$0xff] 0.0
      %141 = vst [vmem:[#allocation5 + $0x30] sm:$0xff] 0.0
      %142 = vst [vmem:[#allocation5 + $0x38] sm:$0xff] 0.0
    $region25: #{tpu_custom_call.1} parent=1 // pred_fallthru
      _
    %v143 = vld [vmem:[%s1] sm:$0xf]
    %v144 = vld [vmem:[%s1 + $0x4] sm:$0xf]
    %v145 = vld [vmem:[%s1 + $0x8] sm:$0xf]
    %v146 = vld [vmem:[%s1 + $0xc] sm:$0xf]
    %v147 = vld [vmem:[%s1 + $0x10] sm:$0xf]
    %v148 = vld [vmem:[%s1 + $0x14] sm:$0xf]
    %v149 = vld [vmem:[%s1 + $0x18] sm:$0xf]
    %v150 = vld [vmem:[%s1 + $0x1c] sm:$0xf]
    %v151 = vld [vmem:[%s3] sm:$0xff]
    %v152 = vld [vmem:[%s3 + $0x8] sm:$0xf]
    %v153 = vld [vmem:[%s3 + $0xc] sm:$0xff]
    %v154 = vld [vmem:[%s3 + $0x14] sm:$0xf]
    %v155 = vld [vmem:[%s3 + $0x18] sm:$0xff]
    %v156 = vld [vmem:[%s3 + $0x20] sm:$0xf]
    %v157 = vld [vmem:[%s3 + $0x24] sm:$0xff]
    %v158 = vld [vmem:[%s3 + $0x2c] sm:$0xf]
    %v167 = vunpack.c.l.b16 %v143
    %v168 = vunpack.c.l.b16 %v144
    %v169 = vunpack.c.l.b16 %v145
    %v170 = vunpack.c.l.b16 %v146
    %v171 = vunpack.c.l.b16 %v147
    %v172 = vunpack.c.l.b16 %v148
    %v173 = vunpack.c.l.b16 %v149
    %v174 = vunpack.c.l.b16 %v150
    %v175 = vpack.c.b16 %v168, %v167
    %v176 = vpack.c.b16 %v170, %v169
    %v177 = vpack.c.b16 %v172, %v171
    %v178 = vpack.c.b16 %v174, %v173
    %v187 = vunpack.c.l.b16 %v151
    %v188 = vunpack.c.h.b16 %v151
    %v189 = vunpack.c.l.b16 %v152
    %v190 = vunpack.c.l.b16 %v153
    %v191 = vunpack.c.h.b16 %v153
    %v192 = vunpack.c.l.b16 %v154
    %v193 = vunpack.c.l.b16 %v155
    %v194 = vunpack.c.h.b16 %v155
    %v195 = vunpack.c.l.b16 %v156
    %v196 = vunpack.c.l.b16 %v157
    %v197 = vunpack.c.h.b16 %v157
    %v198 = vunpack.c.l.b16 %v158
    %v199 = vpack.c.b16 %v190, %v187
    %v200 = vpack.c.b16 %v191, %v188
    %v201 = vpack.c.b16 %v192, %v189
    %v202 = vpack.c.b16 %v196, %v193
    %v203 = vpack.c.b16 %v197, %v194
    %v204 = vpack.c.b16 %v198, %v195
    %vm211 = vcmask 261120
    %v213 = vsel %vm211, %v175, 0
    %v216 = vsel %vm211, %v176, 0
    %v219 = vsel %vm211, %v177, 0
    %v222 = vsel %vm211, %v178, 0
    %224 = vmatprep.subr.bf16.mxu0 0
    %225 = vmatpush1.bf16.msra.mxu0 0
    %226 = vmatprep.subr.bf16.mxu0 0
    %227 = vmatpush1.bf16.msra.mxu0 0
    %228 = vmatprep.subr.bf16.mxu0 0
    %229 = vmatpush1.bf16.msra.mxu0 0
    %230 = vmatprep.subr.bf16.mxu0 0
    %231 = vmatpush1.bf16.msra.mxu0 0
    %232 = vmatprep.subr.bf16.mxu0 0
    %233 = vmatpush1.bf16.msra.mxu0 0
    %234 = vmatprep.subr.bf16.mxu0 0
    %235 = vmatpush1.bf16.msra.mxu0 0
    %236 = vmatprep.subr.bf16.mxu0 %v203
    %237 = vmatpush1.bf16.msra.mxu0 %v202
    %238 = vmatprep.subr.bf16.mxu0 %v200
    %239 = vmatpush1.bf16.msra.mxu0 %v199
    %240 = vmatprep.subr.bf16.mxu0 0
    %241 = vmatpush2.bf16.msra.mxu0 0
    %242 = vmatprep.subr.bf16.mxu0 0
    %243 = vmatpush2.bf16.msra.mxu0 0
    %244 = vmatprep.subr.bf16.mxu0 0
    %245 = vmatpush2.bf16.msra.mxu0 0
    %246 = vmatprep.subr.bf16.mxu0 0
    %247 = vmatpush2.bf16.msra.mxu0 0
    %248 = vmatprep.subr.bf16.mxu0 0
    %249 = vmatpush2.bf16.msra.mxu0 0
    %250 = vmatprep.subr.bf16.mxu0 0
    %251 = vmatpush2.bf16.msra.mxu0 0
    %252 = vmatprep.subr.bf16.mxu0 0
    %253 = vmatpush2.bf16.msra.mxu0 0
    %254 = vmatprep.subr.bf16.mxu0 0
    %255 = vmatpush2.bf16.msra.mxu0 0
    %256 = vmatprep.mubr.bf16.mxu0 0
    %257 = vmatmul.mubr.bf16.gmra.mxu0 %v213
    %v258 = vpop.f32.mrf.mxu0
    %v259 = vadd.f32 0.0, %v258
    %v260 = vpop.f32.mrf.mxu0
    %v261 = vadd.f32 0.0, %v260
    %v262 = vpop.f32.mrf.mxu0
    %v263 = vadd.f32 0.0, %v262
    %v264 = vpop.f32.mrf.mxu0
    %v265 = vadd.f32 0.0, %v264
    %266 = vmatprep.mubr.bf16.mxu0 0
    %267 = vmatmul.mubr.bf16.gmra.mxu0 %v216
    %v268 = vpop.f32.mrf.mxu0
    %v269 = vadd.f32 0.0, %v268
    %v270 = vpop.f32.mrf.mxu0
    %v271 = vadd.f32 0.0, %v270
    %v272 = vpop.f32.mrf.mxu0
    %v273 = vadd.f32 0.0, %v272
    %v274 = vpop.f32.mrf.mxu0
    %v275 = vadd.f32 0.0, %v274
    %276 = vmatprep.mubr.bf16.mxu0 0
    %277 = vmatmul.mubr.bf16.gmra.mxu0 %v219
    %v278 = vpop.f32.mrf.mxu0
    %v279 = vadd.f32 0.0, %v278
    %v280 = vpop.f32.mrf.mxu0
    %v281 = vadd.f32 0.0, %v280
    %v282 = vpop.f32.mrf.mxu0
    %v283 = vadd.f32 0.0, %v282
    %v284 = vpop.f32.mrf.mxu0
    %v285 = vadd.f32 0.0, %v284
    %286 = vmatprep.mubr.bf16.mxu0 0
    %287 = vmatmul.mubr.bf16.gmra.mxu0 %v222
    %v288 = vpop.f32.mrf.mxu0
    %v289 = vadd.f32 0.0, %v288
    %v290 = vpop.f32.mrf.mxu0
    %v291 = vadd.f32 0.0, %v290
    %v292 = vpop.f32.mrf.mxu0
    %v293 = vadd.f32 0.0, %v292
    %v294 = vpop.f32.mrf.mxu0
    %v295 = vadd.f32 0.0, %v294
    %296 = vdwg.mxu0
    %297 = vmatprep.subr.bf16.mxu0 0
    %298 = vmatpush1.bf16.msra.mxu0 0
    %299 = vmatprep.subr.bf16.mxu0 0
    %300 = vmatpush1.bf16.msra.mxu0 0
    %301 = vmatprep.subr.bf16.mxu0 0
    %302 = vmatpush1.bf16.msra.mxu0 0
    %303 = vmatprep.subr.bf16.mxu0 0
    %304 = vmatpush1.bf16.msra.mxu0 0
    %305 = vmatprep.subr.bf16.mxu0 0
    %306 = vmatpush1.bf16.msra.mxu0 0
    %307 = vmatprep.subr.bf16.mxu0 0
    %308 = vmatpush1.bf16.msra.mxu0 0
    %309 = vmatprep.subr.bf16.mxu0 0
    %310 = vmatpush1.bf16.msra.mxu0 %v204
    %311 = vmatprep.subr.bf16.mxu0 0
    %312 = vmatpush1.bf16.msra.mxu0 %v201
    %313 = vmatprep.subr.bf16.mxu0 0
    %314 = vmatpush2.bf16.msra.mxu0 0
    %315 = vmatprep.subr.bf16.mxu0 0
    %316 = vmatpush2.bf16.msra.mxu0 0
    %317 = vmatprep.subr.bf16.mxu0 0
    %318 = vmatpush2.bf16.msra.mxu0 0
    %319 = vmatprep.subr.bf16.mxu0 0
    %320 = vmatpush2.bf16.msra.mxu0 0
    %321 = vmatprep.subr.bf16.mxu0 0
    %322 = vmatpush2.bf16.msra.mxu0 0
    %323 = vmatprep.subr.bf16.mxu0 0
    %324 = vmatpush2.bf16.msra.mxu0 0
    %325 = vmatprep.subr.bf16.mxu0 0
    %326 = vmatpush2.bf16.msra.mxu0 0
    %327 = vmatprep.subr.bf16.mxu0 0
    %328 = vmatpush2.bf16.msra.mxu0 0
    %329 = vmatprep.mubr.bf16.mxu0 0
    %330 = vmatmul.mubr.bf16.gmra.mxu0 %v213
    %v331 = vpop.f32.mrf.mxu0
    %v332 = vadd.f32 0.0, %v331
    %v333 = vpop.f32.mrf.mxu0
    %v334 = vpop.f32.mrf.mxu0
    %v335 = vadd.f32 0.0, %v334
    %v336 = vpop.f32.mrf.mxu0
    %337 = vmatprep.mubr.bf16.mxu0 0
    %338 = vmatmul.mubr.bf16.gmra.mxu0 %v216
    %v339 = vpop.f32.mrf.mxu0
    %v340 = vadd.f32 0.0, %v339
    %v341 = vpop.f32.mrf.mxu0
    %v342 = vpop.f32.mrf.mxu0
    %v343 = vadd.f32 0.0, %v342
    %v344 = vpop.f32.mrf.mxu0
    %345 = vmatprep.mubr.bf16.mxu0 0
    %346 = vmatmul.mubr.bf16.gmra.mxu0 %v219
    %v347 = vpop.f32.mrf.mxu0
    %v348 = vadd.f32 0.0, %v347
    %v349 = vpop.f32.mrf.mxu0
    %v350 = vpop.f32.mrf.mxu0
    %v351 = vadd.f32 0.0, %v350
    %v352 = vpop.f32.mrf.mxu0
    %353 = vmatprep.mubr.bf16.mxu0 0
    %354 = vmatmul.mubr.bf16.gmra.mxu0 %v222
    %v355 = vpop.f32.mrf.mxu0
    %v356 = vadd.f32 0.0, %v355
    %v357 = vpop.f32.mrf.mxu0
    %v358 = vpop.f32.mrf.mxu0
    %v359 = vadd.f32 0.0, %v358
    %v360 = vpop.f32.mrf.mxu0
    %361 = vdwg.mxu0
    %v362 = vpack.c.bf16 %v263, %v259
    %v363 = vpack.c.bf16 %v265, %v261
    %v364 = vpack.c.bf16 %v273, %v269
    %v365 = vpack.c.bf16 %v275, %v271
    %v366 = vpack.c.bf16 %v283, %v279
    %v367 = vpack.c.bf16 %v285, %v281
    %v368 = vpack.c.bf16 %v293, %v289
    %v369 = vpack.c.bf16 %v295, %v291
    %370 = vxpose.xlu0.b32.start [1/16] %v332, 128
    %371 = vxpose.xlu0.b32.cont [2/16] %v335, 128
    %372 = vxpose.xlu0.b32.cont [3/16] %v340, 128
    %373 = vxpose.xlu0.b32.cont [4/16] %v343, 128
    %374 = vxpose.xlu0.b32.cont [5/16] %v348, 128
    %375 = vxpose.xlu0.b32.cont [6/16] %v351, 128
    %376 = vxpose.xlu0.b32.cont [7/16] %v356, 128
    %377 = vxpose.xlu0.b32.cont [8/16] %v359, 128
    %378 = vxpose.xlu0.b32.cont [9/16] 0.0, 128
    %379 = vxpose.xlu0.b32.cont [10/16] 0.0, 128
    %380 = vxpose.xlu0.b32.cont [11/16] 0.0, 128
    %381 = vxpose.xlu0.b32.cont [12/16] 0.0, 128
    %382 = vxpose.xlu0.b32.cont [13/16] 0.0, 128
    %383 = vxpose.xlu0.b32.cont [14/16] 0.0, 128
    %384 = vxpose.xlu0.b32.cont [15/16] 0.0, 128
    %385 = vxpose.xlu0.b32.end [16/16] 0.0, 128
    %v386 = vpop.trf.xlu0
    %v387 = vpop.trf.xlu0
    %v388 = vpop.trf.xlu0
    %v389 = vpop.trf.xlu0
    %v390 = vpop.trf.xlu0
    %v391 = vpop.trf.xlu0
    %v392 = vpop.trf.xlu0
    %v393 = vpop.trf.xlu0
    %v394 = vpop.trf.xlu0
    %v395 = vpop.trf.xlu0
    %v396 = vpop.trf.xlu0
    %v397 = vpop.trf.xlu0
    %v398 = vpop.trf.xlu0
    %v399 = vpop.trf.xlu0
    %v400 = vpop.trf.xlu0
    %v401 = vpop.trf.xlu0
    %v402 = vld [vmem:[%s2] sm:$0xff]
    %vm403 = vnez %v402
    %v404 = vld [vmem:[#allocation2] sm:$0xff]
    %v405 = vld [vmem:[#allocation2 + $0x8] sm:$0xff]
    %v406 = vld [vmem:[#allocation2 + $0x10] sm:$0xff]
    %v407 = vld [vmem:[#allocation2 + $0x18] sm:$0xff]
    %409 = vset.pattern.permute.xlu0 0
    %410 = vperm.xlu0 %409, %v404
    %v411 = vpop.permute.xlu0 %410
    %414 = vset.pattern.permute.xlu0 0
    %415 = vperm.xlu0 %414, %v405
    %v416 = vpop.permute.xlu0 %415
    %419 = vset.pattern.permute.xlu0 0
    %420 = vperm.xlu0 %419, %v406
    %v421 = vpop.permute.xlu0 %420
    %424 = vset.pattern.permute.xlu0 0
    %425 = vperm.xlu0 %424, %v407
    %v426 = vpop.permute.xlu0 %425
    %v428 = vlaneseq
    %v429 = vshrl.u32 %v428, 7
    %v430 = vsub.s32 2, %v429
    %v431 = vrot.slane %v386, %v430
    %v432 = vadd.f32 %v411, %v431
    %v433 = vadd.f32 %v416, %v431
    %v434 = vadd.f32 %v421, %v431
    %v435 = vadd.f32 %v426, %v431
    %v436 = vmul.f32 %v432, 0.2
    %v437 = vmul.f32 %v433, 0.2
    %v438 = vmul.f32 %v434, 0.2
    %v439 = vmul.f32 %v435, 0.2
    %v440 = vmax.f32 %v432, %v436
    %v441 = vmax.f32 %v433, %v437
    %v442 = vmax.f32 %v434, %v438
    %v443 = vmax.f32 %v435, %v439
    %v444 = vsel %vm403, 16843009, 0
    %v445 = vunpack.c.0.s8 %v444
    %v446 = vunpack.c.1.s8 %v444
    %v447 = vunpack.c.2.s8 %v444
    %v448 = vunpack.c.3.s8 %v444
    %v449 = vpack.c.b16 %v445, %v445
    %v450 = vpack.c.b8 %v449, %v449
    %v451 = vpack.c.b16 %v446, %v446
    %v452 = vpack.c.b8 %v451, %v451
    %v453 = vpack.c.b16 %v447, %v447
    %v454 = vpack.c.b8 %v453, %v453
    %v455 = vpack.c.b16 %v448, %v448
    %v456 = vpack.c.b8 %v455, %v455
    %vm457 = vnez %v450
    %vm458 = vnez %v452
    %vm459 = vnez %v454
    %vm460 = vnez %v456
    %v461 = vsel %vm457, 16843009, 0
    %v462 = vsel %vm458, 16843009, 0
    %v463 = vsel %vm459, 16843009, 0
    %v464 = vsel %vm460, 16843009, 0
    %v465 = vunpack.c.0.s8 %v461
    %v466 = vunpack.c.0.s8 %v462
    %v467 = vunpack.c.0.s8 %v463
    %v468 = vunpack.c.0.s8 %v464
    %vm469 = vcmp.ne.s32.totalorder %v465, 0
    %vm470 = vcmp.ne.s32.totalorder %v466, 0
    %vm471 = vcmp.ne.s32.totalorder %v467, 0
    %vm472 = vcmp.ne.s32.totalorder %v468, 0
    %v473 = vsel %vm469, %v440, -1e+30
    %v474 = vsel %vm470, %v441, -1e+30
    %v475 = vsel %vm471, %v442, -1e+30
    %v476 = vsel %vm472, %v443, -1e+30
    %v477 = vld [vmem:[#allocation3] sm:$0xff]
    %v478 = vld [vmem:[#allocation3 + $0x8] sm:$0xff]
    %v479 = vld [vmem:[#allocation3 + $0x10] sm:$0xff]
    %v480 = vld [vmem:[#allocation3 + $0x18] sm:$0xff]
    %vm481 = vcmask 523264
    %v482 = vsel %vm481, %v473, -inf
    %483 = vmax.xlane.f32.xlu0 %v482
    %v484 = vpop.xlane.xlu0 %483
    %v485 = vsel %vm481, %v474, -inf
    %486 = vmax.xlane.f32.xlu0 %v485
    %v487 = vpop.xlane.xlu0 %486
    %v488 = vsel %vm481, %v475, -inf
    %489 = vmax.xlane.f32.xlu0 %v488
    %v490 = vpop.xlane.xlu0 %489
    %v491 = vsel %vm481, %v476, -inf
    %492 = vmax.xlane.f32.xlu0 %v491
    %v493 = vpop.xlane.xlu0 %492
    %v494 = vmax.f32 %v477, %v484
    %v495 = vmax.f32 %v478, %v487
    %v496 = vmax.f32 %v479, %v490
    %v497 = vmax.f32 %v480, %v493
    %v498 = vsub.f32 %v477, %v494
    %v499 = vsub.f32 %v478, %v495
    %v500 = vsub.f32 %v479, %v496
    %v501 = vsub.f32 %v480, %v497
    %v502 = vmul.f32 %v498, 1.442695
    %v503 = vpow.pop %v502
    %v504 = vmul.f32 %v499, 1.442695
    %v505 = vpow.pop %v504
    %v506 = vmul.f32 %v500, 1.442695
    %v507 = vpow.pop %v506
    %v508 = vmul.f32 %v501, 1.442695
    %v509 = vpow.pop %v508
    %511 = vset.pattern.permute.xlu0 0
    %512 = vperm.xlu0 %511, %v494
    %v513 = vpop.permute.xlu0 %512
    %516 = vset.pattern.permute.xlu0 0
    %517 = vperm.xlu0 %516, %v495
    %v518 = vpop.permute.xlu0 %517
    %521 = vset.pattern.permute.xlu0 0
    %522 = vperm.xlu0 %521, %v496
    %v523 = vpop.permute.xlu0 %522
    %526 = vset.pattern.permute.xlu0 0
    %527 = vperm.xlu0 %526, %v497
    %v528 = vpop.permute.xlu0 %527
    %v530 = vsub.f32 %v473, %v513
    %v531 = vsub.f32 %v474, %v518
    %v532 = vsub.f32 %v475, %v523
    %v533 = vsub.f32 %v476, %v528
    %v534 = vmul.f32 %v530, 1.442695
    %v535 = vpow.pop %v534
    %v536 = vmul.f32 %v531, 1.442695
    %v537 = vpow.pop %v536
    %v538 = vmul.f32 %v532, 1.442695
    %v539 = vpow.pop %v538
    %v540 = vmul.f32 %v533, 1.442695
    %v541 = vpow.pop %v540
    %v542 = vsel %vm469, %v535, 0.0
    %v543 = vsel %vm470, %v537, 0.0
    %v544 = vsel %vm471, %v539, 0.0
    %v545 = vsel %vm472, %v541, 0.0
    %v546 = vld [vmem:[#allocation4] sm:$0xff]
    %v547 = vld [vmem:[#allocation4 + $0x8] sm:$0xff]
    %v548 = vld [vmem:[#allocation4 + $0x10] sm:$0xff]
    %v549 = vld [vmem:[#allocation4 + $0x18] sm:$0xff]
    %v550 = vmul.f32 %v503, %v546
    %v551 = vmul.f32 %v505, %v547
    %v552 = vmul.f32 %v507, %v548
    %v553 = vmul.f32 %v509, %v549
    %v554 = vsel %vm481, %v542, 0.0
    %555 = vadd.xlane.f32.xlu0 %v554
    %v556 = vpop.xlane.xlu0 %555
    %v557 = vsel %vm481, %v543, 0.0
    %558 = vadd.xlane.f32.xlu0 %v557
    %v559 = vpop.xlane.xlu0 %558
    %v560 = vsel %vm481, %v544, 0.0
    %561 = vadd.xlane.f32.xlu0 %v560
    %v562 = vpop.xlane.xlu0 %561
    %v563 = vsel %vm481, %v545, 0.0
    %564 = vadd.xlane.f32.xlu0 %v563
    %v565 = vpop.xlane.xlu0 %564
    %v566 = vadd.f32 %v550, %v556
    %v567 = vadd.f32 %v551, %v559
    %v568 = vadd.f32 %v552, %v562
    %v569 = vadd.f32 %v553, %v565
    %vm570 = vcmask 7168
    %571 = vst.msk [vmem:[#allocation4] sm:$0xff] %vm570, %v566
    %572 = vst.msk [vmem:[#allocation4 + $0x8] sm:$0xff] %vm570, %v567
    %573 = vst.msk [vmem:[#allocation4 + $0x10] sm:$0xff] %vm570, %v568
    %574 = vst.msk [vmem:[#allocation4 + $0x18] sm:$0xff] %vm570, %v569
    %v575 = vld [vmem:[#allocation5] sm:$0xff]
    %v576 = vld [vmem:[#allocation5 + $0x8] sm:$0xff]
    %v577 = vld [vmem:[#allocation5 + $0x10] sm:$0xff]
    %v578 = vld [vmem:[#allocation5 + $0x18] sm:$0xff]
    %580 = vset.pattern.permute.xlu0 0
    %581 = vperm.xlu0 %580, %v503
    %v582 = vpop.permute.xlu0 %581
    %585 = vset.pattern.permute.xlu0 0
    %586 = vperm.xlu0 %585, %v505
    %v587 = vpop.permute.xlu0 %586
    %590 = vset.pattern.permute.xlu0 0
    %591 = vperm.xlu0 %590, %v507
    %v592 = vpop.permute.xlu0 %591
    %595 = vset.pattern.permute.xlu0 0
    %596 = vperm.xlu0 %595, %v509
    %v597 = vpop.permute.xlu0 %596
    %v599 = vmul.f32 %v582, %v575
    %v600 = vmul.f32 %v587, %v576
    %v601 = vmul.f32 %v592, %v577
    %v602 = vmul.f32 %v597, %v578
    %v603 = vpack.c.bf16 %v543, %v542
    %v604 = vpack.c.bf16 %v545, %v544
    %v606 = vsel %vm481, %v603, 0
    %v609 = vsel %vm481, %v604, 0
    %611 = vmatprep.subr.bf16.mxu0 0
    %612 = vmatpush1.bf16.msra.mxu0 0
    %613 = vmatprep.subr.bf16.mxu0 0
    %614 = vmatpush1.bf16.msra.mxu0 0
    %615 = vmatprep.subr.bf16.mxu0 0
    %616 = vmatpush1.bf16.msra.mxu0 0
    %617 = vmatprep.subr.bf16.mxu0 0
    %618 = vmatpush1.bf16.msra.mxu0 0
    %619 = vmatprep.subr.bf16.mxu0 0
    %620 = vmatpush1.bf16.msra.mxu0 %v368
    %621 = vmatprep.subr.bf16.mxu0 0
    %622 = vmatpush1.bf16.msra.mxu0 %v366
    %623 = vmatprep.subr.bf16.mxu0 0
    %624 = vmatpush1.bf16.msra.mxu0 %v364
    %625 = vmatprep.subr.bf16.mxu0 0
    %626 = vmatpush1.bf16.msra.mxu0 %v362
    %627 = vmatprep.subr.bf16.mxu0 0
    %628 = vmatpush2.bf16.msra.mxu0 0
    %629 = vmatprep.subr.bf16.mxu0 0
    %630 = vmatpush2.bf16.msra.mxu0 0
    %631 = vmatprep.subr.bf16.mxu0 0
    %632 = vmatpush2.bf16.msra.mxu0 0
    %633 = vmatprep.subr.bf16.mxu0 0
    %634 = vmatpush2.bf16.msra.mxu0 0
    %635 = vmatprep.subr.bf16.mxu0 0
    %636 = vmatpush2.bf16.msra.mxu0 0
    %637 = vmatprep.subr.bf16.mxu0 0
    %638 = vmatpush2.bf16.msra.mxu0 0
    %639 = vmatprep.subr.bf16.mxu0 0
    %640 = vmatpush2.bf16.msra.mxu0 0
    %641 = vmatprep.subr.bf16.mxu0 0
    %642 = vmatpush2.bf16.msra.mxu0 0
    %643 = vmatprep.mubr.bf16.mxu0 0
    %644 = vmatmul.mubr.bf16.gmra.mxu0 %v606
    %v645 = vpop.f32.mrf.mxu0
    %v646 = vadd.f32 0.0, %v645
    %v647 = vpop.f32.mrf.mxu0
    %v648 = vpop.f32.mrf.mxu0
    %v649 = vadd.f32 0.0, %v648
    %v650 = vpop.f32.mrf.mxu0
    %651 = vmatprep.mubr.bf16.mxu0 0
    %652 = vmatmul.mubr.bf16.gmra.mxu0 %v609
    %v653 = vpop.f32.mrf.mxu0
    %v654 = vadd.f32 0.0, %v653
    %v655 = vpop.f32.mrf.mxu0
    %v656 = vpop.f32.mrf.mxu0
    %v657 = vadd.f32 0.0, %v656
    %v658 = vpop.f32.mrf.mxu0
    %659 = vdwg.mxu0
    %v660 = vadd.f32 %v599, %v646
    %v661 = vadd.f32 %v600, %v649
    %v662 = vadd.f32 %v601, %v654
    %v663 = vadd.f32 %v602, %v657
    %664 = vst [vmem:[#allocation5] sm:$0xff] %v660
    %665 = vst [vmem:[#allocation5 + $0x8] sm:$0xff] %v661
    %666 = vst [vmem:[#allocation5 + $0x10] sm:$0xff] %v662
    %667 = vst [vmem:[#allocation5 + $0x18] sm:$0xff] %v663
    %668 = vst.msk [vmem:[#allocation3] sm:$0xff] %vm570, %v494
    %669 = vst.msk [vmem:[#allocation3 + $0x8] sm:$0xff] %vm570, %v495
    %670 = vst.msk [vmem:[#allocation3 + $0x10] sm:$0xff] %vm570, %v496
    %671 = vst.msk [vmem:[#allocation3 + $0x18] sm:$0xff] %vm570, %v497
    %v672 = vld [vmem:[#allocation2] sm:$0xff]
    %v673 = vld [vmem:[#allocation2 + $0x8] sm:$0xff]
    %v674 = vld [vmem:[#allocation2 + $0x10] sm:$0xff]
    %v675 = vld [vmem:[#allocation2 + $0x18] sm:$0xff]
    %677 = vset.pattern.permute.xlu0 1
    %678 = vperm.xlu0 %677, %v672
    %v679 = vpop.permute.xlu0 %678
    %682 = vset.pattern.permute.xlu0 1
    %683 = vperm.xlu0 %682, %v673
    %v684 = vpop.permute.xlu0 %683
    %687 = vset.pattern.permute.xlu0 1
    %688 = vperm.xlu0 %687, %v674
    %v689 = vpop.permute.xlu0 %688
    %692 = vset.pattern.permute.xlu0 1
    %693 = vperm.xlu0 %692, %v675
    %v694 = vpop.permute.xlu0 %693
    %v696 = vlaneseq
    %v697 = vshrl.u32 %v696, 7
    %v698 = vsub.s32 3, %v697
    %v699 = vrot.slane %v386, %v698
    %v700 = vadd.f32 %v679, %v699
    %v701 = vadd.f32 %v684, %v699
    %v702 = vadd.f32 %v689, %v699
    %v703 = vadd.f32 %v694, %v699
    %v704 = vmul.f32 %v700, 0.2
    %v705 = vmul.f32 %v701, 0.2
    %v706 = vmul.f32 %v702, 0.2
    %v707 = vmul.f32 %v703, 0.2
    %v708 = vmax.f32 %v700, %v704
    %v709 = vmax.f32 %v701, %v705
    %v710 = vmax.f32 %v702, %v706
    %v711 = vmax.f32 %v703, %v707
    %v712 = vsel %vm469, %v708, -1e+30
    %v713 = vsel %vm470, %v709, -1e+30
    %v714 = vsel %vm471, %v710, -1e+30
    %v715 = vsel %vm472, %v711, -1e+30
    %s716 = scalar_lea.vmem [#allocation3], 32
    %v717 = vld [vmem:[%s716] sm:$0xff]
    %v718 = vld [vmem:[%s716 + $0x8] sm:$0xff]
    %v719 = vld [vmem:[%s716 + $0x10] sm:$0xff]
    %v720 = vld [vmem:[%s716 + $0x18] sm:$0xff]
    %v721 = vsel %vm481, %v712, -inf
    %722 = vmax.xlane.f32.xlu0 %v721
    %v723 = vpop.xlane.xlu0 %722
    %v724 = vsel %vm481, %v713, -inf
    %725 = vmax.xlane.f32.xlu0 %v724
    %v726 = vpop.xlane.xlu0 %725
    %v727 = vsel %vm481, %v714, -inf
    %728 = vmax.xlane.f32.xlu0 %v727
    %v729 = vpop.xlane.xlu0 %728
    %v730 = vsel %vm481, %v715, -inf
    %731 = vmax.xlane.f32.xlu0 %v730
    %v732 = vpop.xlane.xlu0 %731
    %v733 = vmax.f32 %v717, %v723
    %v734 = vmax.f32 %v718, %v726
    %v735 = vmax.f32 %v719, %v729
    %v736 = vmax.f32 %v720, %v732
    %v737 = vsub.f32 %v717, %v733
    %v738 = vsub.f32 %v718, %v734
    %v739 = vsub.f32 %v719, %v735
    %v740 = vsub.f32 %v720, %v736
    %v741 = vmul.f32 %v737, 1.442695
    %v742 = vpow.pop %v741
    %v743 = vmul.f32 %v738, 1.442695
    %v744 = vpow.pop %v743
    %v745 = vmul.f32 %v739, 1.442695
    %v746 = vpow.pop %v745
    %v747 = vmul.f32 %v740, 1.442695
    %v748 = vpow.pop %v747
    %750 = vset.pattern.permute.xlu0 0
    %751 = vperm.xlu0 %750, %v733
    %v752 = vpop.permute.xlu0 %751
    %755 = vset.pattern.permute.xlu0 0
    %756 = vperm.xlu0 %755, %v734
    %v757 = vpop.permute.xlu0 %756
    %760 = vset.pattern.permute.xlu0 0
    %761 = vperm.xlu0 %760, %v735
    %v762 = vpop.permute.xlu0 %761
    %765 = vset.pattern.permute.xlu0 0
    %766 = vperm.xlu0 %765, %v736
    %v767 = vpop.permute.xlu0 %766
    %v769 = vsub.f32 %v712, %v752
    %v770 = vsub.f32 %v713, %v757
    %v771 = vsub.f32 %v714, %v762
    %v772 = vsub.f32 %v715, %v767
    %v773 = vmul.f32 %v769, 1.442695
    %v774 = vpow.pop %v773
    %v775 = vmul.f32 %v770, 1.442695
    %v776 = vpow.pop %v775
    %v777 = vmul.f32 %v771, 1.442695
    %v778 = vpow.pop %v777
    %v779 = vmul.f32 %v772, 1.442695
    %v780 = vpow.pop %v779
    %v781 = vsel %vm469, %v774, 0.0
    %v782 = vsel %vm470, %v776, 0.0
    %v783 = vsel %vm471, %v778, 0.0
    %v784 = vsel %vm472, %v780, 0.0
    %s785 = scalar_lea.vmem [#allocation4], 32
    %v786 = vld [vmem:[%s785] sm:$0xff]
    %v787 = vld [vmem:[%s785 + $0x8] sm:$0xff]
    %v788 = vld [vmem:[%s785 + $0x10] sm:$0xff]
    %v789 = vld [vmem:[%s785 + $0x18] sm:$0xff]
    %v790 = vmul.f32 %v742, %v786
    %v791 = vmul.f32 %v744, %v787
    %v792 = vmul.f32 %v746, %v788
    %v793 = vmul.f32 %v748, %v789
    %v794 = vsel %vm481, %v781, 0.0
    %795 = vadd.xlane.f32.xlu0 %v794
    %v796 = vpop.xlane.xlu0 %795
    %v797 = vsel %vm481, %v782, 0.0
    %798 = vadd.xlane.f32.xlu0 %v797
    %v799 = vpop.xlane.xlu0 %798
    %v800 = vsel %vm481, %v783, 0.0
    %801 = vadd.xlane.f32.xlu0 %v800
    %v802 = vpop.xlane.xlu0 %801
    %v803 = vsel %vm481, %v784, 0.0
    %804 = vadd.xlane.f32.xlu0 %v803
    %v805 = vpop.xlane.xlu0 %804
    %v806 = vadd.f32 %v790, %v796
    %v807 = vadd.f32 %v791, %v799
    %v808 = vadd.f32 %v792, %v802
    %v809 = vadd.f32 %v793, %v805
    %810 = vst.msk [vmem:[%s785] sm:$0xff] %vm570, %v806
    %811 = vst.msk [vmem:[%s785 + $0x8] sm:$0xff] %vm570, %v807
    %812 = vst.msk [vmem:[%s785 + $0x10] sm:$0xff] %vm570, %v808
    %813 = vst.msk [vmem:[%s785 + $0x18] sm:$0xff] %vm570, %v809
    %s814 = scalar_lea.vmem [#allocation5], 32
    %v815 = vld [vmem:[%s814] sm:$0xff]
    %v816 = vld [vmem:[%s814 + $0x8] sm:$0xff]
    %v817 = vld [vmem:[%s814 + $0x10] sm:$0xff]
    %v818 = vld [vmem:[%s814 + $0x18] sm:$0xff]
    %820 = vset.pattern.permute.xlu0 0
    %821 = vperm.xlu0 %820, %v742
    %v822 = vpop.permute.xlu0 %821
    %825 = vset.pattern.permute.xlu0 0
    %826 = vperm.xlu0 %825, %v744
    %v827 = vpop.permute.xlu0 %826
    %830 = vset.pattern.permute.xlu0 0
    %831 = vperm.xlu0 %830, %v746
    %v832 = vpop.permute.xlu0 %831
    %835 = vset.pattern.permute.xlu0 0
    %836 = vperm.xlu0 %835, %v748
    %v837 = vpop.permute.xlu0 %836
    %v839 = vmul.f32 %v822, %v815
    %v840 = vmul.f32 %v827, %v816
    %v841 = vmul.f32 %v832, %v817
    %v842 = vmul.f32 %v837, %v818
    %v843 = vpack.c.bf16 %v782, %v781
    %v844 = vpack.c.bf16 %v784, %v783
    %v846 = vsel %vm481, %v843, 0
    %v849 = vsel %vm481, %v844, 0
    %851 = vmatprep.subr.bf16.mxu0 0
    %852 = vmatpush1.bf16.msra.mxu0 0
    %853 = vmatprep.subr.bf16.mxu0 0
    %854 = vmatpush1.bf16.msra.mxu0 0
    %855 = vmatprep.subr.bf16.mxu0 0
    %856 = vmatpush1.bf16.msra.mxu0 0
    %857 = vmatprep.subr.bf16.mxu0 0
    %858 = vmatpush1.bf16.msra.mxu0 0
    %859 = vmatprep.subr.bf16.mxu0 0
    %860 = vmatpush1.bf16.msra.mxu0 %v369
    %861 = vmatprep.subr.bf16.mxu0 0
    %862 = vmatpush1.bf16.msra.mxu0 %v367
    %863 = vmatprep.subr.bf16.mxu0 0
    %864 = vmatpush1.bf16.msra.mxu0 %v365
    %865 = vmatprep.subr.bf16.mxu0 0
    %866 = vmatpush1.bf16.msra.mxu0 %v363
    %867 = vmatprep.subr.bf16.mxu0 0
    %868 = vmatpush2.bf16.msra.mxu0 0
    %869 = vmatprep.subr.bf16.mxu0 0
    %870 = vmatpush2.bf16.msra.mxu0 0
    %871 = vmatprep.subr.bf16.mxu0 0
    %872 = vmatpush2.bf16.msra.mxu0 0
    %873 = vmatprep.subr.bf16.mxu0 0
    %874 = vmatpush2.bf16.msra.mxu0 0
    %875 = vmatprep.subr.bf16.mxu0 0
    %876 = vmatpush2.bf16.msra.mxu0 0
    %877 = vmatprep.subr.bf16.mxu0 0
    %878 = vmatpush2.bf16.msra.mxu0 0
    %879 = vmatprep.subr.bf16.mxu0 0
    %880 = vmatpush2.bf16.msra.mxu0 0
    %881 = vmatprep.subr.bf16.mxu0 0
    %882 = vmatpush2.bf16.msra.mxu0 0
    %883 = vmatprep.mubr.bf16.mxu0 0
    %884 = vmatmul.mubr.bf16.gmra.mxu0 %v846
    %v885 = vpop.f32.mrf.mxu0
    %v886 = vadd.f32 0.0, %v885
    %v887 = vpop.f32.mrf.mxu0
    %v888 = vpop.f32.mrf.mxu0
    %v889 = vadd.f32 0.0, %v888
    %v890 = vpop.f32.mrf.mxu0
    %891 = vmatprep.mubr.bf16.mxu0 0
    %892 = vmatmul.mubr.bf16.gmra.mxu0 %v849
    %v893 = vpop.f32.mrf.mxu0
    %v894 = vadd.f32 0.0, %v893
    %v895 = vpop.f32.mrf.mxu0
    %v896 = vpop.f32.mrf.mxu0
    %v897 = vadd.f32 0.0, %v896
    %v898 = vpop.f32.mrf.mxu0
    %899 = vdwg.mxu0
    %v900 = vadd.f32 %v839, %v886
    %v901 = vadd.f32 %v840, %v889
    %v902 = vadd.f32 %v841, %v894
    %v903 = vadd.f32 %v842, %v897
    %904 = vst [vmem:[%s814] sm:$0xff] %v900
    %905 = vst [vmem:[%s814 + $0x8] sm:$0xff] %v901
    %906 = vst [vmem:[%s814 + $0x10] sm:$0xff] %v902
    %907 = vst [vmem:[%s814 + $0x18] sm:$0xff] %v903
    %908 = vst.msk [vmem:[%s716] sm:$0xff] %vm570, %v733
    %909 = vst.msk [vmem:[%s716 + $0x8] sm:$0xff] %vm570, %v734
    %910 = vst.msk [vmem:[%s716 + $0x10] sm:$0xff] %vm570, %v735
    %911 = vst.msk [vmem:[%s716 + $0x18] sm:$0xff] %vm570, %v736
    // Predicated region
    $region26: #{tpu_custom_call.1} parent=1 // pred_check
      %p912 = pneg %p24
    $region27: #{tpu_custom_call.1} parent=1 // pred_check_branch
      %914 = sbr.rel (%p912) target = $region29
    $region28: #{tpu_custom_call.1} parent=1 // pred_region
      %v915 = vld [vmem:[#allocation5] sm:$0xff]
      %v916 = vld [vmem:[#allocation5 + $0x8] sm:$0xff]
      %v917 = vld [vmem:[#allocation5 + $0x10] sm:$0xff]
      %v918 = vld [vmem:[#allocation5 + $0x18] sm:$0xff]
      %v919 = vld [vmem:[#allocation4] sm:$0xff]
      %v920 = vld [vmem:[#allocation4 + $0x8] sm:$0xff]
      %v921 = vld [vmem:[#allocation4 + $0x10] sm:$0xff]
      %v922 = vld [vmem:[#allocation4 + $0x18] sm:$0xff]
      %v923 = vmax.f32 %v919, 1e-20
      %v924 = vmax.f32 %v920, 1e-20
      %v925 = vmax.f32 %v921, 1e-20
      %v926 = vmax.f32 %v922, 1e-20
      %v927 = vrcp.pop %v923
      %v928 = vrcp.pop %v924
      %v929 = vrcp.pop %v925
      %v930 = vrcp.pop %v926
      %932 = vset.pattern.permute.xlu0 0
      %933 = vperm.xlu0 %932, %v927
      %v934 = vpop.permute.xlu0 %933
      %937 = vset.pattern.permute.xlu0 0
      %938 = vperm.xlu0 %937, %v928
      %v939 = vpop.permute.xlu0 %938
      %942 = vset.pattern.permute.xlu0 0
      %943 = vperm.xlu0 %942, %v929
      %v944 = vpop.permute.xlu0 %943
      %947 = vset.pattern.permute.xlu0 0
      %948 = vperm.xlu0 %947, %v930
      %v949 = vpop.permute.xlu0 %948
      %v951 = vmul.f32 %v915, %v934
      %v952 = vmul.f32 %v916, %v939
      %v953 = vmul.f32 %v917, %v944
      %v954 = vmul.f32 %v918, %v949
      %v955 = vld [vmem:[%s4] sm:$0x1]
      %v957 = vlaneseq
      %v958 = vshrl.u32 %v957, 7
      %v959 = vsub.s32 0, %v958
      %v960 = vrot.slane %v955, %v959
      %v962 = vadd.f32 %v951, %v960
      %v963 = vadd.f32 %v952, %v960
      %v964 = vadd.f32 %v953, %v960
      %v965 = vadd.f32 %v954, %v960
      %vm966 = vcmp.gt.f32.partialorder %v962, 0.0
      %vm967 = vcmp.gt.f32.partialorder %v963, 0.0
      %vm968 = vcmp.gt.f32.partialorder %v964, 0.0
      %vm969 = vcmp.gt.f32.partialorder %v965, 0.0
      %v970 = vmin.f32 %v962, 0.0
      %v971 = vmin.f32 %v963, 0.0
      %v972 = vmin.f32 %v964, 0.0
      %v973 = vmin.f32 %v965, 0.0
      %v974 = vmul.f32 %v970, 1.442695
      %v975 = vpow.pop %v974
      %v976 = vmul.f32 %v971, 1.442695
      %v977 = vpow.pop %v976
      %v978 = vmul.f32 %v972, 1.442695
      %v979 = vpow.pop %v978
      %v980 = vmul.f32 %v973, 1.442695
      %v981 = vpow.pop %v980
      %v982 = vsub.f32 %v975, 1.0
      %v983 = vsub.f32 %v977, 1.0
      %v984 = vsub.f32 %v979, 1.0
      %v985 = vsub.f32 %v981, 1.0
      %v986 = vsel %vm966, %v962, %v982
      %v987 = vsel %vm967, %v963, %v983
      %v988 = vsel %vm968, %v964, %v984
      %v989 = vsel %vm969, %v965, %v985
      %v990 = vpack.c.bf16 %v987, %v986
      %v991 = vpack.c.bf16 %v989, %v988
      %v994 = vunpack.c.l.b16 %v990
      %v995 = vunpack.c.h.b16 %v990
      %v996 = vunpack.c.l.b16 %v991
      %v997 = vunpack.c.h.b16 %v991
      %v998 = vpack.c.b16 %v994, %v994
      %v999 = vpack.c.b16 %v995, %v995
      %v1000 = vpack.c.b16 %v996, %v996
      %v1001 = vpack.c.b16 %v997, %v997
      %1006 = vst [vmem:[#allocation6] sm:$0xf] %v998
      %1007 = vst [vmem:[#allocation6 + $0x8] sm:$0xf] %v999
      %1008 = vst [vmem:[#allocation6 + $0x10] sm:$0xf] %v1000
      %1009 = vst [vmem:[#allocation6 + $0x18] sm:$0xf] %v1001
      %v1010 = vld [vmem:[%s814] sm:$0xff]
      %v1011 = vld [vmem:[%s814 + $0x8] sm:$0xff]
      %v1012 = vld [vmem:[%s814 + $0x10] sm:$0xff]
      %v1013 = vld [vmem:[%s814 + $0x18] sm:$0xff]
      %v1014 = vld [vmem:[%s785] sm:$0xff]
      %v1015 = vld [vmem:[%s785 + $0x8] sm:$0xff]
      %v1016 = vld [vmem:[%s785 + $0x10] sm:$0xff]
      %v1017 = vld [vmem:[%s785 + $0x18] sm:$0xff]
      %v1018 = vmax.f32 %v1014, 1e-20
      %v1019 = vmax.f32 %v1015, 1e-20
      %v1020 = vmax.f32 %v1016, 1e-20
      %v1021 = vmax.f32 %v1017, 1e-20
      %v1022 = vrcp.pop %v1018
      %v1023 = vrcp.pop %v1019
      %v1024 = vrcp.pop %v1020
      %v1025 = vrcp.pop %v1021
      %1027 = vset.pattern.permute.xlu0 0
      %1028 = vperm.xlu0 %1027, %v1022
      %v1029 = vpop.permute.xlu0 %1028
      %1032 = vset.pattern.permute.xlu0 0
      %1033 = vperm.xlu0 %1032, %v1023
      %v1034 = vpop.permute.xlu0 %1033
      %1037 = vset.pattern.permute.xlu0 0
      %1038 = vperm.xlu0 %1037, %v1024
      %v1039 = vpop.permute.xlu0 %1038
      %1042 = vset.pattern.permute.xlu0 0
      %1043 = vperm.xlu0 %1042, %v1025
      %v1044 = vpop.permute.xlu0 %1043
      %v1046 = vmul.f32 %v1010, %v1029
      %v1047 = vmul.f32 %v1011, %v1034
      %v1048 = vmul.f32 %v1012, %v1039
      %v1049 = vmul.f32 %v1013, %v1044
      %v1050 = vld [vmem:[%s4 + $0x1] sm:$0x1]
      %v1052 = vlaneseq
      %v1053 = vshrl.u32 %v1052, 7
      %v1054 = vsub.s32 0, %v1053
      %v1055 = vrot.slane %v1050, %v1054
      %v1057 = vadd.f32 %v1046, %v1055
      %v1058 = vadd.f32 %v1047, %v1055
      %v1059 = vadd.f32 %v1048, %v1055
      %v1060 = vadd.f32 %v1049, %v1055
      %vm1061 = vcmp.gt.f32.partialorder %v1057, 0.0
      %vm1062 = vcmp.gt.f32.partialorder %v1058, 0.0
      %vm1063 = vcmp.gt.f32.partialorder %v1059, 0.0
      %vm1064 = vcmp.gt.f32.partialorder %v1060, 0.0
      %v1065 = vmin.f32 %v1057, 0.0
      %v1066 = vmin.f32 %v1058, 0.0
      %v1067 = vmin.f32 %v1059, 0.0
      %v1068 = vmin.f32 %v1060, 0.0
      %v1069 = vmul.f32 %v1065, 1.442695
      %v1070 = vpow.pop %v1069
      %v1071 = vmul.f32 %v1066, 1.442695
      %v1072 = vpow.pop %v1071
      %v1073 = vmul.f32 %v1067, 1.442695
      %v1074 = vpow.pop %v1073
      %v1075 = vmul.f32 %v1068, 1.442695
      %v1076 = vpow.pop %v1075
      %v1077 = vsub.f32 %v1070, 1.0
      %v1078 = vsub.f32 %v1072, 1.0
      %v1079 = vsub.f32 %v1074, 1.0
      %v1080 = vsub.f32 %v1076, 1.0
      %v1081 = vsel %vm1061, %v1057, %v1077
      %v1082 = vsel %vm1062, %v1058, %v1078
      %v1083 = vsel %vm1063, %v1059, %v1079
      %v1084 = vsel %vm1064, %v1060, %v1080
      %v1085 = vpack.c.bf16 %v1082, %v1081
      %v1086 = vpack.c.bf16 %v1084, %v1083
      %v1089 = vunpack.c.l.b16 %v1085
      %v1090 = vunpack.c.h.b16 %v1085
      %v1091 = vunpack.c.l.b16 %v1086
      %v1092 = vunpack.c.h.b16 %v1086
      %v1093 = vpack.c.b16 %v1089, %v1089
      %v1094 = vpack.c.b16 %v1090, %v1090
      %v1095 = vpack.c.b16 %v1091, %v1091
      %v1096 = vpack.c.b16 %v1092, %v1092
      %1101 = vst [vmem:[#allocation6 + $0x4] sm:$0xf] %v1093
      %1102 = vst [vmem:[#allocation6 + $0xc] sm:$0xf] %v1094
      %1103 = vst [vmem:[#allocation6 + $0x14] sm:$0xf] %v1095
      %1104 = vst [vmem:[#allocation6 + $0x1c] sm:$0xf] %v1096
    $region29: #{tpu_custom_call.1} parent=1 // pred_fallthru
      _
    // Predicated region
    $region30: #{tpu_custom_call.1} parent=1 // pred_check
      _
    $region31: #{tpu_custom_call.1} parent=1 // pred_check_branch
      %1106 = sbr.rel (0) target = $region33
    $region32: #{tpu_custom_call.1} parent=1 // pred_region
      %s1108 = ssub.s32 512, 512
      %1109 = vsyncadd [#allocation7], %s1108
      %s1110 = sshll.u32 [#allocation6], 4
      %s1111 = int_to_ptr.vmem [resolvable:$true] %s1110
      %1116 = dma.vmem_to_hbm [thread:$0]  %s1111, 512, %s5, [#allocation7], 128, 128, 8
    $region33: #{tpu_custom_call.1} parent=1 // pred_fallthru
      _
    // Predicated region
    $region34: #{tpu_custom_call.1} parent=1 // pred_check
      _
    $region35: #{tpu_custom_call.1} parent=1 // pred_check_branch
      %1118 = sbr.rel (0) target = $region37
    $region36: #{tpu_custom_call.1} parent=1 // pred_region
      %1119 = dma.done [#allocation7], 512
    $region37: #{tpu_custom_call.1} parent=1 // pred_fallthru
      _
    %1120 = vsyncpa [#allocation7], 1

</llo_original>
